<compile_context>
chip_gen: v5e
topology: v5e:2x2
jax: 0.10.0
libtpu: 0.0.40
codegen_flags: <defaults>
</compile_context>

<pallas_src>
import jax
import jax.numpy as jnp
from jax import lax
from jax.experimental import pallas as pl
from jax.experimental.pallas import tpu as pltpu


# ---------------------------------------------------------------------------
# Pass A: conv 3x3 s2 p1 + maxpool 2x2 s2 for one row-tile, plus partial stats
# ---------------------------------------------------------------------------
def _conv_pool_stats_kernel(v00, v00n, v01, v01n, v10, v11, w_ref, b_ref,
                            conv_ref, pool_ref,
                            sumc_ref, ssqc_ref, sump_ref, ssqp_ref):
    tr, wop1, cin = v00.shape
    wo = wop1 - 1
    m = tr * wo

    a00, a00n = v00[...], v00n[...]
    a01, a01n = v01[...], v01n[...]
    a10, a11 = v10[...], v11[...]

    def tap(a, dc):
        # (tr, Wo, Cin) -> (tr*Wo, Cin); pixels on sublanes, channels on lanes.
        # TODO(synk): assumes Wo % 8 == 0 for a layout-preserving reshape.
        return a[:, dc:dc + wo, :].reshape(m, cin)

    # Conv taps ordered (kh, kw) row-major to match w_ref's tap ordering.
    taps = (tap(a00, 0), tap(a01, 0), tap(a00, 1),     # kh = 0
            tap(a10, 0), tap(a11, 0), tap(a10, 1),     # kh = 1
            tap(a00n, 0), tap(a01n, 0), tap(a00n, 1))  # kh = 2

    w = w_ref[...]                                     # (9, Cin, Cc)
    acc = jnp.dot(taps[0], w[0], preferred_element_type=jnp.float32)
    for k in range(1, 9):
        acc = acc + jnp.dot(taps[k], w[k], preferred_element_type=jnp.float32)
    conv = acc + b_ref[...]                            # (m, Cc)

    # 2x2 maxpool taps coincide with conv taps (1,1), (1,2), (2,1), (2,2).
    pool = jnp.maximum(jnp.maximum(taps[4], taps[5]),
                       jnp.maximum(taps[7], taps[8]))  # (m, Cin)

    conv_ref[...] = conv
    pool_ref[...] = pool
    # Per-tile, per-channel partial sums for the global (two-pass) BatchNorm.
    sumc_ref[...] = jnp.sum(conv, axis=0, keepdims=True)[None]
    ssqc_ref[...] = jnp.sum(conv * conv, axis=0, keepdims=True)[None]
    sump_ref[...] = jnp.sum(pool, axis=0, keepdims=True)[None]
    ssqp_ref[...] = jnp.sum(pool * pool, axis=0, keepdims=True)[None]


# ---------------------------------------------------------------------------
# Pass B: affine BatchNorm + ReLU + channel concat (elementwise, tiled)
# ---------------------------------------------------------------------------
def _bn_relu_kernel(conv_ref, pool_ref, sc_ref, tc_ref, sp_ref, tp_ref, out_ref):
    yc = jnp.maximum(conv_ref[...] * sc_ref[...] + tc_ref[...], 0.0)
    yp = jnp.maximum(pool_ref[...] * sp_ref[...] + tp_ref[...], 0.0)
    out_ref[...] = jnp.concatenate([yc, yp], axis=-1)   # single full-width store


def _pick_row_tile(rows, wo, target_px=1024):
    """Largest divisor of `rows` whose tile is sublane-aligned and <= target."""
    divs = [d for d in range(1, rows + 1) if rows % d == 0]
    legal = [d for d in divs if (d * wo) % 8 == 0 or d == rows]
    fit = [d for d in legal if d * wo <= target_px]
    return max(fit) if fit else min(legal)


def downsampler_block_nhwc(x_nhwc, conv_w, conv_b, gamma, beta, eps=1e-3):
    """NHWC core.  x: (N, H, W, Cin); conv_w: (Cc, Cin, 3, 3) (PyTorch OIHW)."""
    N, H, W, Cin = x_nhwc.shape
    Cc = conv_w.shape[0]
    nout = Cc + Cin
    Ho, Wo = H // 2, W // 2
    rows = N * Ho
    M = rows * Wo

    x = x_nhwc.astype(jnp.float32)
    xp = jnp.pad(x, ((0, 0), (1, 1), (1, 1), (0, 0)))

    # Stride-2 phases of the padded image; each (N, Ho+1, Wo+1, Cin).
    p00 = xp[:, 0::2, 0::2, :]
    p01 = xp[:, 0::2, 1::2, :]
    p10 = xp[:, 1::2, 0::2, :]
    p11 = xp[:, 1::2, 1::2, :]

    def rows_view(p, off):   # rows r (off=0) or r+1 (off=1) of a phase
        return p[:, off:off + Ho].reshape(rows, Wo + 1, Cin)

    v00, v00n = rows_view(p00, 0), rows_view(p00, 1)
    v01, v01n = rows_view(p01, 0), rows_view(p01, 1)
    v10, v11 = rows_view(p10, 0), rows_view(p11, 0)

    # (Cc, Cin, 3, 3) -> (9, Cin, Cc), tap-major (kh*3 + kw).
    w_taps = jnp.transpose(conv_w, (2, 3, 1, 0)).reshape(9, Cin, Cc).astype(jnp.float32)
    bias = conv_b.reshape(1, Cc).astype(jnp.float32)

    tr = _pick_row_tile(rows, Wo)
    tm = tr * Wo
    nt = rows // tr

    view_spec = pl.BlockSpec((tr, Wo + 1, Cin), lambda i: (i, 0, 0))
    stat_c_spec = pl.BlockSpec((1, 1, Cc), lambda i: (i, 0, 0))
    stat_p_spec = pl.BlockSpec((1, 1, Cin), lambda i: (i, 0, 0))

    cparams = pltpu.CompilerParams(dimension_semantics=("parallel",),
                                   vmem_limit_bytes=32 * 1024 * 1024)

    cost_a = pl.CostEstimate(
        flops=2 * M * 9 * Cin * Cc + 8 * M * (Cc + Cin),
        transcendentals=0,
        bytes_accessed=4 * (6 * rows * (Wo + 1) * Cin + 9 * Cin * Cc
                            + M * (Cc + Cin) + 4 * nt * (Cc + Cin)))

    conv_pre, pool_pre, sumc, ssqc, sump, ssqp = pl.pallas_call(
        _conv_pool_stats_kernel,
        grid=(nt,),
        in_specs=[view_spec] * 6 + [
            pl.BlockSpec((9, Cin, Cc), lambda i: (0, 0, 0)),
            pl.BlockSpec((1, Cc), lambda i: (0, 0)),
        ],
        out_specs=(
            pl.BlockSpec((tm, Cc), lambda i: (i, 0)),
            pl.BlockSpec((tm, Cin), lambda i: (i, 0)),
            stat_c_spec, stat_c_spec, stat_p_spec, stat_p_spec,
        ),
        out_shape=(
            jax.ShapeDtypeStruct((M, Cc), jnp.float32),
            jax.ShapeDtypeStruct((M, Cin), jnp.float32),
            jax.ShapeDtypeStruct((nt, 1, Cc), jnp.float32),
            jax.ShapeDtypeStruct((nt, 1, Cc), jnp.float32),
            jax.ShapeDtypeStruct((nt, 1, Cin), jnp.float32),
            jax.ShapeDtypeStruct((nt, 1, Cin), jnp.float32),
        ),
        compiler_params=cparams,
        cost_estimate=cost_a,
    )(v00, v00n, v01, v01n, v10, v11, w_taps, bias)

    # ---- fold global BN statistics (tiny, plain JAX) ----
    gamma = gamma.astype(jnp.float32)
    beta = beta.astype(jnp.float32)
    inv_m = 1.0 / M
    mean_c = jnp.sum(sumc, axis=(0, 1)) * inv_m
    var_c = jnp.maximum(jnp.sum(ssqc, axis=(0, 1)) * inv_m - mean_c * mean_c, 0.0)
    mean_p = jnp.sum(sump, axis=(0, 1)) * inv_m
    var_p = jnp.maximum(jnp.sum(ssqp, axis=(0, 1)) * inv_m - mean_p * mean_p, 0.0)
    scale_c = gamma[:Cc] * lax.rsqrt(var_c + eps)
    shift_c = beta[:Cc] - mean_c * scale_c
    scale_p = gamma[Cc:] * lax.rsqrt(var_p + eps)
    shift_p = beta[Cc:] - mean_p * scale_p

    cost_b = pl.CostEstimate(flops=4 * M * nout, transcendentals=0,
                             bytes_accessed=4 * 2 * M * nout)

    out_flat = pl.pallas_call(
        _bn_relu_kernel,
        grid=(nt,),
        in_specs=[
            pl.BlockSpec((tm, Cc), lambda i: (i, 0)),
            pl.BlockSpec((tm, Cin), lambda i: (i, 0)),
            pl.BlockSpec((1, Cc), lambda i: (0, 0)),
            pl.BlockSpec((1, Cc), lambda i: (0, 0)),
            pl.BlockSpec((1, Cin), lambda i: (0, 0)),
            pl.BlockSpec((1, Cin), lambda i: (0, 0)),
        ],
        out_specs=pl.BlockSpec((tm, nout), lambda i: (i, 0)),
        out_shape=jax.ShapeDtypeStruct((M, nout), jnp.float32),
        compiler_params=cparams,
        cost_estimate=cost_b,
    )(conv_pre, pool_pre,
      scale_c.reshape(1, Cc), shift_c.reshape(1, Cc),
      scale_p.reshape(1, Cin), shift_p.reshape(1, Cin))

    return out_flat.reshape(N, Ho, Wo, nout)


def downsampler_block(x_nchw, conv_w, conv_b, gamma, beta, eps=1e-3):
    """PyTorch-facing NCHW adapter.
    TODO(synk): if the surrounding model stays NHWC, call
    downsampler_block_nhwc directly and drop both transposes."""
    y = downsampler_block_nhwc(jnp.transpose(x_nchw, (0, 2, 3, 1)),
                               conv_w, conv_b, gamma, beta, eps)
    return jnp.transpose(y, (0, 3, 1, 2))


def reference(x, conv_w, conv_b, gamma, beta, eps=1e-3):
    """Pure-JAX NCHW reference matching the PyTorch forward."""
    conv = lax.conv_general_dilated(
        x, conv_w, window_strides=(2, 2), padding=((1, 1), (1, 1)),
        dimension_numbers=('NCHW', 'OIHW', 'NCHW')) + conv_b.reshape(1, -1, 1, 1)
    pool = lax.reduce_window(x, -jnp.inf, lax.max, (1, 1, 2, 2), (1, 1, 2, 2), 'VALID')
    cat = jnp.concatenate([conv, pool], axis=1)
    mean = jnp.mean(cat, axis=(0, 2, 3), keepdims=True)
    var = jnp.mean(jnp.square(cat - mean), axis=(0, 2, 3), keepdims=True)
    y = (cat - mean) / jnp.sqrt(var + eps) * gamma.reshape(1, -1, 1, 1) + beta.reshape(1, -1, 1, 1)
    return jnp.maximum(y, 0.0)


if __name__ == "__main__":
    ninput, noutput = 4, 16
    N, H, W = 2, 16, 16
    Cc = noutput - ninput

    key = jax.random.PRNGKey(0)
    k_x, k_w, k_b, k_g, k_be = jax.random.split(key, 5)
    x = jax.random.normal(k_x, (N, ninput, H, W), dtype=jnp.float32)
    conv_w = 0.1 * jax.random.normal(k_w, (Cc, ninput, 3, 3), dtype=jnp.float32)
    conv_b = 0.1 * jax.random.normal(k_b, (Cc,), dtype=jnp.float32)
    gamma = 1.0 + 0.1 * jax.random.normal(k_g, (noutput,), dtype=jnp.float32)
    beta = 0.1 * jax.random.normal(k_be, (noutput,), dtype=jnp.float32)

    fwd = jax.jit(downsampler_block)
    out = jax.block_until_ready(fwd(x, conv_w, conv_b, gamma, beta))

    ref = reference(x, conv_w, conv_b, gamma, beta)
    assert out.shape == (N, noutput, H // 2, W // 2), out.shape
    err = float(jnp.max(jnp.abs(out - ref)))
    assert err < 2e-4, err
    print("KERNEL_OK")
</pallas_src>

<mosaic_0001>
module attributes {stable_mosaic.version = 11 : i64} {
  func.func @_bn_relu_kernel(%arg0: i32, %arg1: memref<128x12xf32, #tpu.memory_space<vmem>>, %arg2: memref<128x4xf32, #tpu.memory_space<vmem>>, %arg3: memref<1x12xf32, #tpu.memory_space<vmem>>, %arg4: memref<1x12xf32, #tpu.memory_space<vmem>>, %arg5: memref<1x4xf32, #tpu.memory_space<vmem>>, %arg6: memref<1x4xf32, #tpu.memory_space<vmem>>, %arg7: memref<128x16xf32, #tpu.memory_space<vmem>>) attributes {dimension_semantics = [#tpu.dimension_semantics<parallel>], iteration_bounds = array<i64: 1>, scalar_prefetch = 0 : i64, scratch_operands = 0 : i64, tpu.core_type = #tpu.core_type<tc>, window_params = [{transform_indices = @transform_0, window_bounds = array<i64: 128, 12>}, {transform_indices = @transform_1, window_bounds = array<i64: 128, 4>}, {pipeline_mode = #tpu.pipeline_mode<synchronous>, transform_indices = @transform_2, window_bounds = array<i64: 1, 12>}, {pipeline_mode = #tpu.pipeline_mode<synchronous>, transform_indices = @transform_3, window_bounds = array<i64: 1, 12>}, {pipeline_mode = #tpu.pipeline_mode<synchronous>, transform_indices = @transform_4, window_bounds = array<i64: 1, 4>}, {pipeline_mode = #tpu.pipeline_mode<synchronous>, transform_indices = @transform_5, window_bounds = array<i64: 1, 4>}, {transform_indices = @transform_6, window_bounds = array<i64: 128, 16>}]} {
    %c0 = arith.constant 0 : index
    %c0_0 = arith.constant 0 : index
    %0 = vector.load %arg1[%c0, %c0_0] : memref<128x12xf32, #tpu.memory_space<vmem>>, vector<128x12xf32>
    %c0_1 = arith.constant 0 : index
    %c0_2 = arith.constant 0 : index
    %1 = vector.load %arg3[%c0_1, %c0_2] : memref<1x12xf32, #tpu.memory_space<vmem>>, vector<1x12xf32>
    %2 = vector.broadcast %1 : vector<1x12xf32> to vector<128x12xf32>
    %3 = arith.mulf %0, %2 : vector<128x12xf32>
    %c0_3 = arith.constant 0 : index
    %c0_4 = arith.constant 0 : index
    %4 = vector.load %arg4[%c0_3, %c0_4] : memref<1x12xf32, #tpu.memory_space<vmem>>, vector<1x12xf32>
    %5 = vector.broadcast %4 : vector<1x12xf32> to vector<128x12xf32>
    %6 = arith.addf %3, %5 : vector<128x12xf32>
    %cst = arith.constant 0.000000e+00 : f32
    %7 = vector.broadcast %cst : f32 to vector<128x12xf32>
    %8 = arith.maximumf %6, %7 : vector<128x12xf32>
    %c0_5 = arith.constant 0 : index
    %c0_6 = arith.constant 0 : index
    %9 = vector.load %arg2[%c0_5, %c0_6] : memref<128x4xf32, #tpu.memory_space<vmem>>, vector<128x4xf32>
    %c0_7 = arith.constant 0 : index
    %c0_8 = arith.constant 0 : index
    %10 = vector.load %arg5[%c0_7, %c0_8] : memref<1x4xf32, #tpu.memory_space<vmem>>, vector<1x4xf32>
    %11 = vector.broadcast %10 : vector<1x4xf32> to vector<128x4xf32>
    %12 = arith.mulf %9, %11 : vector<128x4xf32>
    %c0_9 = arith.constant 0 : index
    %c0_10 = arith.constant 0 : index
    %13 = vector.load %arg6[%c0_9, %c0_10] : memref<1x4xf32, #tpu.memory_space<vmem>>, vector<1x4xf32>
    %14 = vector.broadcast %13 : vector<1x4xf32> to vector<128x4xf32>
    %15 = arith.addf %12, %14 : vector<128x4xf32>
    %cst_11 = arith.constant 0.000000e+00 : f32
    %16 = vector.broadcast %cst_11 : f32 to vector<128x4xf32>
    %17 = arith.maximumf %15, %16 : vector<128x4xf32>
    %18 = tpu.concatenate %8, %17 in 1 : vector<128x12xf32>, vector<128x4xf32> -> vector<128x16xf32>
    %c0_12 = arith.constant 0 : index
    %c0_13 = arith.constant 0 : index
    %19 = vector.load %arg7[%c0_12, %c0_13] : memref<128x16xf32, #tpu.memory_space<vmem>>, vector<128x16xf32>
    tpu.vector_store %arg7[%c0_12, %c0_13], %18 {strides = array<i32>} : memref<128x16xf32, #tpu.memory_space<vmem>>, vector<128x16xf32>,
    return
  }
  func.func @transform_0(%arg0: i32) -> (i32, i32) {
    %c0_i32 = arith.constant 0 : i32
    %c0_i32_0 = arith.constant 0 : i32
    return %arg0, %c0_i32 : i32, i32
  }
  func.func @transform_1(%arg0: i32) -> (i32, i32) {
    %c0_i32 = arith.constant 0 : i32
    %c0_i32_0 = arith.constant 0 : i32
    return %arg0, %c0_i32 : i32, i32
  }
  func.func @transform_2(%arg0: i32) -> (i32, i32) {
    %c0_i32 = arith.constant 0 : i32
    %c0_i32_0 = arith.constant 0 : i32
    %c0_i32_1 = arith.constant 0 : i32
    return %c0_i32, %c0_i32_0 : i32, i32
  }
  func.func @transform_3(%arg0: i32) -> (i32, i32) {
    %c0_i32 = arith.constant 0 : i32
    %c0_i32_0 = arith.constant 0 : i32
    %c0_i32_1 = arith.constant 0 : i32
    return %c0_i32, %c0_i32_0 : i32, i32
  }
  func.func @transform_4(%arg0: i32) -> (i32, i32) {
    %c0_i32 = arith.constant 0 : i32
    %c0_i32_0 = arith.constant 0 : i32
    %c0_i32_1 = arith.constant 0 : i32
    return %c0_i32, %c0_i32_0 : i32, i32
  }
  func.func @transform_5(%arg0: i32) -> (i32, i32) {
    %c0_i32 = arith.constant 0 : i32
    %c0_i32_0 = arith.constant 0 : i32
    %c0_i32_1 = arith.constant 0 : i32
    return %c0_i32, %c0_i32_0 : i32, i32
  }
  func.func @transform_6(%arg0: i32) -> (i32, i32) {
    %c0_i32 = arith.constant 0 : i32
    %c0_i32_0 = arith.constant 0 : i32
    return %arg0, %c0_i32 : i32, i32
  }
}

module attributes {stable_mosaic.version = 11 : i64} {
  func.func @_conv_pool_stats_kernel(%arg0: i32, %arg1: memref<16x9x4xf32, #tpu.memory_space<vmem>>, %arg2: memref<16x9x4xf32, #tpu.memory_space<vmem>>, %arg3: memref<16x9x4xf32, #tpu.memory_space<vmem>>, %arg4: memref<16x9x4xf32, #tpu.memory_space<vmem>>, %arg5: memref<16x9x4xf32, #tpu.memory_space<vmem>>, %arg6: memref<16x9x4xf32, #tpu.memory_space<vmem>>, %arg7: memref<9x4x12xf32, #tpu.memory_space<vmem>>, %arg8: memref<1x12xf32, #tpu.memory_space<vmem>>, %arg9: memref<128x12xf32, #tpu.memory_space<vmem>>, %arg10: memref<128x4xf32, #tpu.memory_space<vmem>>, %arg11: memref<1x1x12xf32, #tpu.memory_space<vmem>>, %arg12: memref<1x1x12xf32, #tpu.memory_space<vmem>>, %arg13: memref<1x1x4xf32, #tpu.memory_space<vmem>>, %arg14: memref<1x1x4xf32, #tpu.memory_space<vmem>>) attributes {dimension_semantics = [#tpu.dimension_semantics<parallel>], iteration_bounds = array<i64: 1>, scalar_prefetch = 0 : i64, scratch_operands = 0 : i64, tpu.core_type = #tpu.core_type<tc>, window_params = [{transform_indices = @transform_0, window_bounds = array<i64: 16, 9, 4>}, {transform_indices = @transform_1, window_bounds = array<i64: 16, 9, 4>}, {transform_indices = @transform_2, window_bounds = array<i64: 16, 9, 4>}, {transform_indices = @transform_3, window_bounds = array<i64: 16, 9, 4>}, {transform_indices = @transform_4, window_bounds = array<i64: 16, 9, 4>}, {transform_indices = @transform_5, window_bounds = array<i64: 16, 9, 4>}, {pipeline_mode = #tpu.pipeline_mode<synchronous>, transform_indices = @transform_6, window_bounds = array<i64: 9, 4, 12>}, {pipeline_mode = #tpu.pipeline_mode<synchronous>, transform_indices = @transform_7, window_bounds = array<i64: 1, 12>}, {transform_indices = @transform_8, window_bounds = array<i64: 128, 12>}, {transform_indices = @transform_9, window_bounds = array<i64: 128, 4>}, {transform_indices = @transform_10, window_bounds = array<i64: 1, 1, 12>}, {transform_indices = @transform_11, window_bounds = array<i64: 1, 1, 12>}, {transform_indices = @transform_12, window_bounds = array<i64: 1, 1, 4>}, {transform_indices = @transform_13, window_bounds = array<i64: 1, 1, 4>}]} {
    %c0 = arith.constant 0 : index
    %c0_0 = arith.constant 0 : index
    %c0_1 = arith.constant 0 : index
    %0 = vector.load %arg1[%c0, %c0_0, %c0_1] : memref<16x9x4xf32, #tpu.memory_space<vmem>>, vector<16x9x4xf32>
    %c0_2 = arith.constant 0 : index
    %c0_3 = arith.constant 0 : index
    %c0_4 = arith.constant 0 : index
    %1 = vector.load %arg2[%c0_2, %c0_3, %c0_4] : memref<16x9x4xf32, #tpu.memory_space<vmem>>, vector<16x9x4xf32>
    %c0_5 = arith.constant 0 : index
    %c0_6 = arith.constant 0 : index
    %c0_7 = arith.constant 0 : index
    %2 = vector.load %arg3[%c0_5, %c0_6, %c0_7] : memref<16x9x4xf32, #tpu.memory_space<vmem>>, vector<16x9x4xf32>
    %c0_8 = arith.constant 0 : index
    %c0_9 = arith.constant 0 : index
    %c0_10 = arith.constant 0 : index
    %3 = vector.load %arg4[%c0_8, %c0_9, %c0_10] : memref<16x9x4xf32, #tpu.memory_space<vmem>>, vector<16x9x4xf32>
    %c0_11 = arith.constant 0 : index
    %c0_12 = arith.constant 0 : index
    %c0_13 = arith.constant 0 : index
    %4 = vector.load %arg5[%c0_11, %c0_12, %c0_13] : memref<16x9x4xf32, #tpu.memory_space<vmem>>, vector<16x9x4xf32>
    %c0_14 = arith.constant 0 : index
    %c0_15 = arith.constant 0 : index
    %c0_16 = arith.constant 0 : index
    %5 = vector.load %arg6[%c0_14, %c0_15, %c0_16] : memref<16x9x4xf32, #tpu.memory_space<vmem>>, vector<16x9x4xf32>
    %6 = vector.extract_strided_slice %0 {offsets = [0, 0, 0], sizes = [16, 8, 4], strides = [1, 1, 1]} : vector<16x9x4xf32> to vector<16x8x4xf32>
    %7 = vector.shape_cast %6 : vector<16x8x4xf32> to vector<128x4xf32>
    %8 = vector.extract_strided_slice %2 {offsets = [0, 0, 0], sizes = [16, 8, 4], strides = [1, 1, 1]} : vector<16x9x4xf32> to vector<16x8x4xf32>
    %9 = vector.shape_cast %8 : vector<16x8x4xf32> to vector<128x4xf32>
    %10 = vector.extract_strided_slice %0 {offsets = [0, 1, 0], sizes = [16, 8, 4], strides = [1, 1, 1]} : vector<16x9x4xf32> to vector<16x8x4xf32>
    %11 = vector.shape_cast %10 : vector<16x8x4xf32> to vector<128x4xf32>
    %12 = vector.extract_strided_slice %4 {offsets = [0, 0, 0], sizes = [16, 8, 4], strides = [1, 1, 1]} : vector<16x9x4xf32> to vector<16x8x4xf32>
    %13 = vector.shape_cast %12 : vector<16x8x4xf32> to vector<128x4xf32>
    %14 = vector.extract_strided_slice %5 {offsets = [0, 0, 0], sizes = [16, 8, 4], strides = [1, 1, 1]} : vector<16x9x4xf32> to vector<16x8x4xf32>
    %15 = vector.shape_cast %14 : vector<16x8x4xf32> to vector<128x4xf32>
    %16 = vector.extract_strided_slice %4 {offsets = [0, 1, 0], sizes = [16, 8, 4], strides = [1, 1, 1]} : vector<16x9x4xf32> to vector<16x8x4xf32>
    %17 = vector.shape_cast %16 : vector<16x8x4xf32> to vector<128x4xf32>
    %18 = vector.extract_strided_slice %1 {offsets = [0, 0, 0], sizes = [16, 8, 4], strides = [1, 1, 1]} : vector<16x9x4xf32> to vector<16x8x4xf32>
    %19 = vector.shape_cast %18 : vector<16x8x4xf32> to vector<128x4xf32>
    %20 = vector.extract_strided_slice %3 {offsets = [0, 0, 0], sizes = [16, 8, 4], strides = [1, 1, 1]} : vector<16x9x4xf32> to vector<16x8x4xf32>
    %21 = vector.shape_cast %20 : vector<16x8x4xf32> to vector<128x4xf32>
    %22 = vector.extract_strided_slice %1 {offsets = [0, 1, 0], sizes = [16, 8, 4], strides = [1, 1, 1]} : vector<16x9x4xf32> to vector<16x8x4xf32>
    %23 = vector.shape_cast %22 : vector<16x8x4xf32> to vector<128x4xf32>
    %c0_17 = arith.constant 0 : index
    %c0_18 = arith.constant 0 : index
    %c0_19 = arith.constant 0 : index
    %24 = vector.load %arg7[%c0_17, %c0_18, %c0_19] : memref<9x4x12xf32, #tpu.memory_space<vmem>>, vector<9x4x12xf32>
    %25 = vector.extract_strided_slice %24 {offsets = [0, 0, 0], sizes = [1, 4, 12], strides = [1, 1, 1]} : vector<9x4x12xf32> to vector<1x4x12xf32>
    %26 = vector.shape_cast %25 : vector<1x4x12xf32> to vector<4x12xf32>
    %cst = arith.constant dense<0.000000e+00> : vector<128x12xf32>
    %27 = tpu.matmul %7, %26, %cst {dimension_numbers = #tpu.dot_dimension_numbers<[1], [0], [0], [1], [0, 0, 1, 1], [], []>} : vector<128x4xf32>, vector<4x12xf32>, vector<128x12xf32> -> vector<128x12xf32>
    %28 = vector.extract_strided_slice %24 {offsets = [1, 0, 0], sizes = [1, 4, 12], strides = [1, 1, 1]} : vector<9x4x12xf32> to vector<1x4x12xf32>
    %29 = vector.shape_cast %28 : vector<1x4x12xf32> to vector<4x12xf32>
    %cst_20 = arith.constant dense<0.000000e+00> : vector<128x12xf32>
    %30 = tpu.matmul %9, %29, %cst_20 {dimension_numbers = #tpu.dot_dimension_numbers<[1], [0], [0], [1], [0, 0, 1, 1], [], []>} : vector<128x4xf32>, vector<4x12xf32>, vector<128x12xf32> -> vector<128x12xf32>
    %31 = arith.addf %27, %30 : vector<128x12xf32>
    %32 = vector.extract_strided_slice %24 {offsets = [2, 0, 0], sizes = [1, 4, 12], strides = [1, 1, 1]} : vector<9x4x12xf32> to vector<1x4x12xf32>
    %33 = vector.shape_cast %32 : vector<1x4x12xf32> to vector<4x12xf32>
    %cst_21 = arith.constant dense<0.000000e+00> : vector<128x12xf32>
    %34 = tpu.matmul %11, %33, %cst_21 {dimension_numbers = #tpu.dot_dimension_numbers<[1], [0], [0], [1], [0, 0, 1, 1], [], []>} : vector<128x4xf32>, vector<4x12xf32>, vector<128x12xf32> -> vector<128x12xf32>
    %35 = arith.addf %31, %34 : vector<128x12xf32>
    %36 = vector.extract_strided_slice %24 {offsets = [3, 0, 0], sizes = [1, 4, 12], strides = [1, 1, 1]} : vector<9x4x12xf32> to vector<1x4x12xf32>
    %37 = vector.shape_cast %36 : vector<1x4x12xf32> to vector<4x12xf32>
    %cst_22 = arith.constant dense<0.000000e+00> : vector<128x12xf32>
    %38 = tpu.matmul %13, %37, %cst_22 {dimension_numbers = #tpu.dot_dimension_numbers<[1], [0], [0], [1], [0, 0, 1, 1], [], []>} : vector<128x4xf32>, vector<4x12xf32>, vector<128x12xf32> -> vector<128x12xf32>
    %39 = arith.addf %35, %38 : vector<128x12xf32>
    %40 = vector.extract_strided_slice %24 {offsets = [4, 0, 0], sizes = [1, 4, 12], strides = [1, 1, 1]} : vector<9x4x12xf32> to vector<1x4x12xf32>
    %41 = vector.shape_cast %40 : vector<1x4x12xf32> to vector<4x12xf32>
    %cst_23 = arith.constant dense<0.000000e+00> : vector<128x12xf32>
    %42 = tpu.matmul %15, %41, %cst_23 {dimension_numbers = #tpu.dot_dimension_numbers<[1], [0], [0], [1], [0, 0, 1, 1], [], []>} : vector<128x4xf32>, vector<4x12xf32>, vector<128x12xf32> -> vector<128x12xf32>
    %43 = arith.addf %39, %42 : vector<128x12xf32>
    %44 = vector.extract_strided_slice %24 {offsets = [5, 0, 0], sizes = [1, 4, 12], strides = [1, 1, 1]} : vector<9x4x12xf32> to vector<1x4x12xf32>
    %45 = vector.shape_cast %44 : vector<1x4x12xf32> to vector<4x12xf32>
    %cst_24 = arith.constant dense<0.000000e+00> : vector<128x12xf32>
    %46 = tpu.matmul %17, %45, %cst_24 {dimension_numbers = #tpu.dot_dimension_numbers<[1], [0], [0], [1], [0, 0, 1, 1], [], []>} : vector<128x4xf32>, vector<4x12xf32>, vector<128x12xf32> -> vector<128x12xf32>
    %47 = arith.addf %43, %46 : vector<128x12xf32>
    %48 = vector.extract_strided_slice %24 {offsets = [6, 0, 0], sizes = [1, 4, 12], strides = [1, 1, 1]} : vector<9x4x12xf32> to vector<1x4x12xf32>
    %49 = vector.shape_cast %48 : vector<1x4x12xf32> to vector<4x12xf32>
    %cst_25 = arith.constant dense<0.000000e+00> : vector<128x12xf32>
    %50 = tpu.matmul %19, %49, %cst_25 {dimension_numbers = #tpu.dot_dimension_numbers<[1], [0], [0], [1], [0, 0, 1, 1], [], []>} : vector<128x4xf32>, vector<4x12xf32>, vector<128x12xf32> -> vector<128x12xf32>
    %51 = arith.addf %47, %50 : vector<128x12xf32>
    %52 = vector.extract_strided_slice %24 {offsets = [7, 0, 0], sizes = [1, 4, 12], strides = [1, 1, 1]} : vector<9x4x12xf32> to vector<1x4x12xf32>
    %53 = vector.shape_cast %52 : vector<1x4x12xf32> to vector<4x12xf32>
    %cst_26 = arith.constant dense<0.000000e+00> : vector<128x12xf32>
    %54 = tpu.matmul %21, %53, %cst_26 {dimension_numbers = #tpu.dot_dimension_numbers<[1], [0], [0], [1], [0, 0, 1, 1], [], []>} : vector<128x4xf32>, vector<4x12xf32>, vector<128x12xf32> -> vector<128x12xf32>
    %55 = arith.addf %51, %54 : vector<128x12xf32>
    %56 = vector.extract_strided_slice %24 {offsets = [8, 0, 0], sizes = [1, 4, 12], strides = [1, 1, 1]} : vector<9x4x12xf32> to vector<1x4x12xf32>
    %57 = vector.shape_cast %56 : vector<1x4x12xf32> to vector<4x12xf32>
    %cst_27 = arith.constant dense<0.000000e+00> : vector<128x12xf32>
    %58 = tpu.matmul %23, %57, %cst_27 {dimension_numbers = #tpu.dot_dimension_numbers<[1], [0], [0], [1], [0, 0, 1, 1], [], []>} : vector<128x4xf32>, vector<4x12xf32>, vector<128x12xf32> -> vector<128x12xf32>
    %59 = arith.addf %55, %58 : vector<128x12xf32>
    %c0_28 = arith.constant 0 : index
    %c0_29 = arith.constant 0 : index
    %60 = vector.load %arg8[%c0_28, %c0_29] : memref<1x12xf32, #tpu.memory_space<vmem>>, vector<1x12xf32>
    %61 = vector.broadcast %60 : vector<1x12xf32> to vector<128x12xf32>
    %62 = arith.addf %59, %61 : vector<128x12xf32>
    %63 = arith.maximumf %15, %17 : vector<128x4xf32>
    %64 = arith.maximumf %21, %23 : vector<128x4xf32>
    %65 = arith.maximumf %63, %64 : vector<128x4xf32>
    %c0_30 = arith.constant 0 : index
    %c0_31 = arith.constant 0 : index
    %66 = vector.load %arg9[%c0_30, %c0_31] : memref<128x12xf32, #tpu.memory_space<vmem>>, vector<128x12xf32>
    tpu.vector_store %arg9[%c0_30, %c0_31], %62 {strides = array<i32>} : memref<128x12xf32, #tpu.memory_space<vmem>>, vector<128x12xf32>,
    %c0_32 = arith.constant 0 : index
    %c0_33 = arith.constant 0 : index
    %67 = vector.load %arg10[%c0_32, %c0_33] : memref<128x4xf32, #tpu.memory_space<vmem>>, vector<128x4xf32>
    tpu.vector_store %arg10[%c0_32, %c0_33], %65 {strides = array<i32>} : memref<128x4xf32, #tpu.memory_space<vmem>>, vector<128x4xf32>,
    %cst_34 = arith.constant dense<0.000000e+00> : vector<12xf32>
    %68 = vector.multi_reduction <add>, %62, %cst_34 [0] : vector<128x12xf32> to vector<12xf32>
    %69 = vector.shape_cast %68 : vector<12xf32> to vector<1x12xf32>
    %70 = vector.shape_cast %69 : vector<1x12xf32> to vector<1x1x12xf32>
    %c0_35 = arith.constant 0 : index
    %c0_36 = arith.constant 0 : index
    %c0_37 = arith.constant 0 : index
    %71 = vector.load %arg11[%c0_35, %c0_36, %c0_37] : memref<1x1x12xf32, #tpu.memory_space<vmem>>, vector<1x1x12xf32>
    tpu.vector_store %arg11[%c0_35, %c0_36, %c0_37], %70 {strides = array<i32>} : memref<1x1x12xf32, #tpu.memory_space<vmem>>, vector<1x1x12xf32>,
    %72 = arith.mulf %62, %62 : vector<128x12xf32>
    %cst_38 = arith.constant dense<0.000000e+00> : vector<12xf32>
    %73 = vector.multi_reduction <add>, %72, %cst_38 [0] : vector<128x12xf32> to vector<12xf32>
    %74 = vector.shape_cast %73 : vector<12xf32> to vector<1x12xf32>
    %75 = vector.shape_cast %74 : vector<1x12xf32> to vector<1x1x12xf32>
    %c0_39 = arith.constant 0 : index
    %c0_40 = arith.constant 0 : index
    %c0_41 = arith.constant 0 : index
    %76 = vector.load %arg12[%c0_39, %c0_40, %c0_41] : memref<1x1x12xf32, #tpu.memory_space<vmem>>, vector<1x1x12xf32>
    tpu.vector_store %arg12[%c0_39, %c0_40, %c0_41], %75 {strides = array<i32>} : memref<1x1x12xf32, #tpu.memory_space<vmem>>, vector<1x1x12xf32>,
    %cst_42 = arith.constant dense<0.000000e+00> : vector<4xf32>
    %77 = vector.multi_reduction <add>, %65, %cst_42 [0] : vector<128x4xf32> to vector<4xf32>
    %78 = vector.shape_cast %77 : vector<4xf32> to vector<1x4xf32>
    %79 = vector.shape_cast %78 : vector<1x4xf32> to vector<1x1x4xf32>
    %c0_43 = arith.constant 0 : index
    %c0_44 = arith.constant 0 : index
    %c0_45 = arith.constant 0 : index
    %80 = vector.load %arg13[%c0_43, %c0_44, %c0_45] : memref<1x1x4xf32, #tpu.memory_space<vmem>>, vector<1x1x4xf32>
    tpu.vector_store %arg13[%c0_43, %c0_44, %c0_45], %79 {strides = array<i32>} : memref<1x1x4xf32, #tpu.memory_space<vmem>>, vector<1x1x4xf32>,
    %81 = arith.mulf %65, %65 : vector<128x4xf32>
    %cst_46 = arith.constant dense<0.000000e+00> : vector<4xf32>
    %82 = vector.multi_reduction <add>, %81, %cst_46 [0] : vector<128x4xf32> to vector<4xf32>
    %83 = vector.shape_cast %82 : vector<4xf32> to vector<1x4xf32>
    %84 = vector.shape_cast %83 : vector<1x4xf32> to vector<1x1x4xf32>
    %c0_47 = arith.constant 0 : index
    %c0_48 = arith.constant 0 : index
    %c0_49 = arith.constant 0 : index
    %85 = vector.load %arg14[%c0_47, %c0_48, %c0_49] : memref<1x1x4xf32, #tpu.memory_space<vmem>>, vector<1x1x4xf32>
    tpu.vector_store %arg14[%c0_47, %c0_48, %c0_49], %84 {strides = array<i32>} : memref<1x1x4xf32, #tpu.memory_space<vmem>>, vector<1x1x4xf32>,
    return
  }
  func.func @transform_0(%arg0: i32) -> (i32, i32, i32) {
    %c0_i32 = arith.constant 0 : i32
    %c0_i32_0 = arith.constant 0 : i32
    %c0_i32_1 = arith.constant 0 : i32
    return %arg0, %c0_i32, %c0_i32_0 : i32, i32, i32
  }
  func.func @transform_1(%arg0: i32) -> (i32, i32, i32) {
    %c0_i32 = arith.constant 0 : i32
    %c0_i32_0 = arith.constant 0 : i32
    %c0_i32_1 = arith.constant 0 : i32
    return %arg0, %c0_i32, %c0_i32_0 : i32, i32, i32
  }
  func.func @transform_2(%arg0: i32) -> (i32, i32, i32) {
    %c0_i32 = arith.constant 0 : i32
    %c0_i32_0 = arith.constant 0 : i32
    %c0_i32_1 = arith.constant 0 : i32
    return %arg0, %c0_i32, %c0_i32_0 : i32, i32, i32
  }
  func.func @transform_3(%arg0: i32) -> (i32, i32, i32) {
    %c0_i32 = arith.constant 0 : i32
    %c0_i32_0 = arith.constant 0 : i32
    %c0_i32_1 = arith.constant 0 : i32
    return %arg0, %c0_i32, %c0_i32_0 : i32, i32, i32
  }
  func.func @transform_4(%arg0: i32) -> (i32, i32, i32) {
    %c0_i32 = arith.constant 0 : i32
    %c0_i32_0 = arith.constant 0 : i32
    %c0_i32_1 = arith.constant 0 : i32
    return %arg0, %c0_i32, %c0_i32_0 : i32, i32, i32
  }
  func.func @transform_5(%arg0: i32) -> (i32, i32, i32) {
    %c0_i32 = arith.constant 0 : i32
    %c0_i32_0 = arith.constant 0 : i32
    %c0_i32_1 = arith.constant 0 : i32
    return %arg0, %c0_i32, %c0_i32_0 : i32, i32, i32
  }
  func.func @transform_6(%arg0: i32) -> (i32, i32, i32) {
    %c0_i32 = arith.constant 0 : i32
    %c0_i32_0 = arith.constant 0 : i32
    %c0_i32_1 = arith.constant 0 : i32
    %c0_i32_2 = arith.constant 0 : i32
    return %c0_i32, %c0_i32_0, %c0_i32_1 : i32, i32, i32
  }
  func.func @transform_7(%arg0: i32) -> (i32, i32) {
    %c0_i32 = arith.constant 0 : i32
    %c0_i32_0 = arith.constant 0 : i32
    %c0_i32_1 = arith.constant 0 : i32
    return %c0_i32, %c0_i32_0 : i32, i32
  }
  func.func @transform_8(%arg0: i32) -> (i32, i32) {
    %c0_i32 = arith.constant 0 : i32
    %c0_i32_0 = arith.constant 0 : i32
    return %arg0, %c0_i32 : i32, i32
  }
  func.func @transform_9(%arg0: i32) -> (i32, i32) {
    %c0_i32 = arith.constant 0 : i32
    %c0_i32_0 = arith.constant 0 : i32
    return %arg0, %c0_i32 : i32, i32
  }
  func.func @transform_10(%arg0: i32) -> (i32, i32, i32) {
    %c0_i32 = arith.constant 0 : i32
    %c0_i32_0 = arith.constant 0 : i32
    %c0_i32_1 = arith.constant 0 : i32
    return %arg0, %c0_i32, %c0_i32_0 : i32, i32, i32
  }
  func.func @transform_11(%arg0: i32) -> (i32, i32, i32) {
    %c0_i32 = arith.constant 0 : i32
    %c0_i32_0 = arith.constant 0 : i32
    %c0_i32_1 = arith.constant 0 : i32
    return %arg0, %c0_i32, %c0_i32_0 : i32, i32, i32
  }
  func.func @transform_12(%arg0: i32) -> (i32, i32, i32) {
    %c0_i32 = arith.constant 0 : i32
    %c0_i32_0 = arith.constant 0 : i32
    %c0_i32_1 = arith.constant 0 : i32
    return %arg0, %c0_i32, %c0_i32_0 : i32, i32, i32
  }
  func.func @transform_13(%arg0: i32) -> (i32, i32, i32) {
    %c0_i32 = arith.constant 0 : i32
    %c0_i32_0 = arith.constant 0 : i32
    %c0_i32_1 = arith.constant 0 : i32
    return %arg0, %c0_i32, %c0_i32_0 : i32, i32, i32
  }
}

</mosaic_0001>

<llo_original>
// kernel: downsampler_block.3
$region0: #{downsampler_block.3}
  #allocation0 [shape = 'u32[]', space=smem, size = 0x4, offset = 0x4, fixed_abs, tag = 'smem constant byte address 0x4 - core index']
  #allocation1 [shape = 'u32[72,128]{1,0:T(1,128)}', space=vmem, size = 0x9000, scoped, tag = 'internal scratch']
  %s0 = inlined_call_operand.vmem [shape: f32[128,12], index: 0, kind: input, shape index: {}]
  %s1 = inlined_call_operand.vmem [shape: f32[128,4], index: 1, kind: input, shape index: {}]
  %s2 = inlined_call_operand.vmem [shape: f32[1,12], index: 2, kind: input, shape index: {}]
  %s3 = inlined_call_operand.vmem [shape: f32[1,12], index: 3, kind: input, shape index: {}]
  %s4 = inlined_call_operand.vmem [shape: f32[1,4], index: 4, kind: input, shape index: {}]
  %s5 = inlined_call_operand.vmem [shape: f32[1,4], index: 5, kind: input, shape index: {}]
  %s6 = inlined_call_operand.hbm [shape: f32[128,16], index: 6, kind: output, shape index: {}]
  %s7 = sld [smem:[#allocation0]]
  $region34: #{downsampler_block.3} parent=0
    _
  %s9 = ssub.s32 1, %s7
  %s10 = scalar_select 0, %s9, %s7
  $region1: #{downsampler_block.3} parent=0
    #allocation2 [shape = 'u8[65536]{0}', space=vmem, size = 0x10000, scoped, tag = 'output window, operand 0, single buffered']
    #allocation3 [shape = 's32[1]{0}', space=sflag, size = 0x4, scoped, tag = 'scoped memory for downsampler_block.3']
    %11 = vsyncpa [#allocation3], 0
    // Predicated region
    $region2: #{downsampler_block.3} parent=1 // pred_check
      _
    $region3: #{downsampler_block.3} parent=1 // pred_check_branch
      %13 = sbr.rel (0) target = $region5
    $region4: #{downsampler_block.3} parent=1 // pred_region
      _
    $region5: #{downsampler_block.3} parent=1 // pred_fallthru
      _
    // Predicated region
    $region6: #{downsampler_block.3} parent=1 // pred_check
      _
    $region7: #{downsampler_block.3} parent=1 // pred_check_branch
      %15 = sbr.rel (0) target = $region9
    $region8: #{downsampler_block.3} parent=1 // pred_region
      _
    $region9: #{downsampler_block.3} parent=1 // pred_fallthru
      _
    // Predicated region
    $region10: #{downsampler_block.3} parent=1 // pred_check
      _
    $region11: #{downsampler_block.3} parent=1 // pred_check_branch
      %17 = sbr.rel (0) target = $region13
    $region12: #{downsampler_block.3} parent=1 // pred_region
      _
    $region13: #{downsampler_block.3} parent=1 // pred_fallthru
      _
    // Predicated region
    $region14: #{downsampler_block.3} parent=1 // pred_check
      _
    $region15: #{downsampler_block.3} parent=1 // pred_check_branch
      %19 = sbr.rel (0) target = $region17
    $region16: #{downsampler_block.3} parent=1 // pred_region
      _
    $region17: #{downsampler_block.3} parent=1 // pred_fallthru
      _
    // Predicated region
    $region18: #{downsampler_block.3} parent=1 // pred_check
      _
    $region19: #{downsampler_block.3} parent=1 // pred_check_branch
      %21 = sbr.rel (0) target = $region21
    $region20: #{downsampler_block.3} parent=1 // pred_region
      _
    $region21: #{downsampler_block.3} parent=1 // pred_fallthru
      _
    // Predicated region
    $region22: #{downsampler_block.3} parent=1 // pred_check
      _
    $region23: #{downsampler_block.3} parent=1 // pred_check_branch
      %23 = sbr.rel (0) target = $region25
    $region24: #{downsampler_block.3} parent=1 // pred_region
      _
    $region25: #{downsampler_block.3} parent=1 // pred_fallthru
      _
    %v24 = vld [vmem:[%s0] sm:$0xff]
    %v25 = vld [vmem:[%s0 + $0x8] sm:$0xff]
    %v26 = vld [vmem:[%s0 + $0x10] sm:$0xff]
    %v27 = vld [vmem:[%s0 + $0x18] sm:$0xff]
    %v28 = vld [vmem:[%s0 + $0x20] sm:$0xff]
    %v29 = vld [vmem:[%s0 + $0x28] sm:$0xff]
    %v30 = vld [vmem:[%s0 + $0x30] sm:$0xff]
    %v31 = vld [vmem:[%s0 + $0x38] sm:$0xff]
    %v32 = vld [vmem:[%s0 + $0x40] sm:$0xff]
    %v33 = vld [vmem:[%s0 + $0x48] sm:$0xff]
    %v34 = vld [vmem:[%s0 + $0x50] sm:$0xff]
    %v35 = vld [vmem:[%s0 + $0x58] sm:$0xff]
    %v36 = vld [vmem:[%s0 + $0x60] sm:$0xff]
    %v37 = vld [vmem:[%s0 + $0x68] sm:$0xff]
    %v38 = vld [vmem:[%s0 + $0x70] sm:$0xff]
    %v39 = vld [vmem:[%s0 + $0x78] sm:$0xff]
    %v40 = vld [vmem:[%s2] sm:$0x1]
    %v42 = vperm.slane %v40, 0
    %v44 = vmul.f32 %v24, %v42
    %v45 = vmul.f32 %v25, %v42
    %v46 = vmul.f32 %v26, %v42
    %v47 = vmul.f32 %v27, %v42
    %v48 = vmul.f32 %v28, %v42
    %v49 = vmul.f32 %v29, %v42
    %v50 = vmul.f32 %v30, %v42
    %v51 = vmul.f32 %v31, %v42
    %v52 = vmul.f32 %v32, %v42
    %v53 = vmul.f32 %v33, %v42
    %v54 = vmul.f32 %v34, %v42
    %v55 = vmul.f32 %v35, %v42
    %v56 = vmul.f32 %v36, %v42
    %v57 = vmul.f32 %v37, %v42
    %v58 = vmul.f32 %v38, %v42
    %v59 = vmul.f32 %v39, %v42
    %v60 = vld [vmem:[%s3] sm:$0x1]
    %v62 = vperm.slane %v60, 0
    %v64 = vadd.f32 %v44, %v62
    %v65 = vadd.f32 %v45, %v62
    %v66 = vadd.f32 %v46, %v62
    %v67 = vadd.f32 %v47, %v62
    %v68 = vadd.f32 %v48, %v62
    %v69 = vadd.f32 %v49, %v62
    %v70 = vadd.f32 %v50, %v62
    %v71 = vadd.f32 %v51, %v62
    %v72 = vadd.f32 %v52, %v62
    %v73 = vadd.f32 %v53, %v62
    %v74 = vadd.f32 %v54, %v62
    %v75 = vadd.f32 %v55, %v62
    %v76 = vadd.f32 %v56, %v62
    %v77 = vadd.f32 %v57, %v62
    %v78 = vadd.f32 %v58, %v62
    %v79 = vadd.f32 %v59, %v62
    %v80 = vmax.f32 %v64, 0.0
    %v81 = vmax.f32 %v65, 0.0
    %v82 = vmax.f32 %v66, 0.0
    %v83 = vmax.f32 %v67, 0.0
    %v84 = vmax.f32 %v68, 0.0
    %v85 = vmax.f32 %v69, 0.0
    %v86 = vmax.f32 %v70, 0.0
    %v87 = vmax.f32 %v71, 0.0
    %v88 = vmax.f32 %v72, 0.0
    %v89 = vmax.f32 %v73, 0.0
    %v90 = vmax.f32 %v74, 0.0
    %v91 = vmax.f32 %v75, 0.0
    %v92 = vmax.f32 %v76, 0.0
    %v93 = vmax.f32 %v77, 0.0
    %v94 = vmax.f32 %v78, 0.0
    %v95 = vmax.f32 %v79, 0.0
    %v96 = vld [vmem:[%s1] sm:$0xff]
    %v97 = vld [vmem:[%s1 + $0x8] sm:$0xff]
    %v98 = vld [vmem:[%s1 + $0x10] sm:$0xff]
    %v99 = vld [vmem:[%s1 + $0x18] sm:$0xff]
    %v100 = vld [vmem:[%s1 + $0x20] sm:$0xff]
    %v101 = vld [vmem:[%s1 + $0x28] sm:$0xff]
    %v102 = vld [vmem:[%s1 + $0x30] sm:$0xff]
    %v103 = vld [vmem:[%s1 + $0x38] sm:$0xff]
    %v104 = vld [vmem:[%s1 + $0x40] sm:$0xff]
    %v105 = vld [vmem:[%s1 + $0x48] sm:$0xff]
    %v106 = vld [vmem:[%s1 + $0x50] sm:$0xff]
    %v107 = vld [vmem:[%s1 + $0x58] sm:$0xff]
    %v108 = vld [vmem:[%s1 + $0x60] sm:$0xff]
    %v109 = vld [vmem:[%s1 + $0x68] sm:$0xff]
    %v110 = vld [vmem:[%s1 + $0x70] sm:$0xff]
    %v111 = vld [vmem:[%s1 + $0x78] sm:$0xff]
    %v112 = vld [vmem:[%s4] sm:$0x1]
    %v114 = vperm.slane %v112, 0
    %v116 = vmul.f32 %v96, %v114
    %v117 = vmul.f32 %v97, %v114
    %v118 = vmul.f32 %v98, %v114
    %v119 = vmul.f32 %v99, %v114
    %v120 = vmul.f32 %v100, %v114
    %v121 = vmul.f32 %v101, %v114
    %v122 = vmul.f32 %v102, %v114
    %v123 = vmul.f32 %v103, %v114
    %v124 = vmul.f32 %v104, %v114
    %v125 = vmul.f32 %v105, %v114
    %v126 = vmul.f32 %v106, %v114
    %v127 = vmul.f32 %v107, %v114
    %v128 = vmul.f32 %v108, %v114
    %v129 = vmul.f32 %v109, %v114
    %v130 = vmul.f32 %v110, %v114
    %v131 = vmul.f32 %v111, %v114
    %v132 = vld [vmem:[%s5] sm:$0x1]
    %v134 = vperm.slane %v132, 0
    %v136 = vadd.f32 %v116, %v134
    %v137 = vadd.f32 %v117, %v134
    %v138 = vadd.f32 %v118, %v134
    %v139 = vadd.f32 %v119, %v134
    %v140 = vadd.f32 %v120, %v134
    %v141 = vadd.f32 %v121, %v134
    %v142 = vadd.f32 %v122, %v134
    %v143 = vadd.f32 %v123, %v134
    %v144 = vadd.f32 %v124, %v134
    %v145 = vadd.f32 %v125, %v134
    %v146 = vadd.f32 %v126, %v134
    %v147 = vadd.f32 %v127, %v134
    %v148 = vadd.f32 %v128, %v134
    %v149 = vadd.f32 %v129, %v134
    %v150 = vadd.f32 %v130, %v134
    %v151 = vadd.f32 %v131, %v134
    %v152 = vmax.f32 %v136, 0.0
    %v153 = vmax.f32 %v137, 0.0
    %v154 = vmax.f32 %v138, 0.0
    %v155 = vmax.f32 %v139, 0.0
    %v156 = vmax.f32 %v140, 0.0
    %v157 = vmax.f32 %v141, 0.0
    %v158 = vmax.f32 %v142, 0.0
    %v159 = vmax.f32 %v143, 0.0
    %v160 = vmax.f32 %v144, 0.0
    %v161 = vmax.f32 %v145, 0.0
    %v162 = vmax.f32 %v146, 0.0
    %v163 = vmax.f32 %v147, 0.0
    %v164 = vmax.f32 %v148, 0.0
    %v165 = vmax.f32 %v149, 0.0
    %v166 = vmax.f32 %v150, 0.0
    %v167 = vmax.f32 %v151, 0.0
    %184 = vrot.lane.b32.xlu0 %v152, 12
    %v185 = vpop.permute.xlu0 %184
    %186 = vrot.lane.b32.xlu0 %v153, 12
    %v187 = vpop.permute.xlu0 %186
    %188 = vrot.lane.b32.xlu0 %v154, 12
    %v189 = vpop.permute.xlu0 %188
    %190 = vrot.lane.b32.xlu0 %v155, 12
    %v191 = vpop.permute.xlu0 %190
    %192 = vrot.lane.b32.xlu0 %v156, 12
    %v193 = vpop.permute.xlu0 %192
    %194 = vrot.lane.b32.xlu0 %v157, 12
    %v195 = vpop.permute.xlu0 %194
    %196 = vrot.lane.b32.xlu0 %v158, 12
    %v197 = vpop.permute.xlu0 %196
    %198 = vrot.lane.b32.xlu0 %v159, 12
    %v199 = vpop.permute.xlu0 %198
    %200 = vrot.lane.b32.xlu0 %v160, 12
    %v201 = vpop.permute.xlu0 %200
    %202 = vrot.lane.b32.xlu0 %v161, 12
    %v203 = vpop.permute.xlu0 %202
    %204 = vrot.lane.b32.xlu0 %v162, 12
    %v205 = vpop.permute.xlu0 %204
    %206 = vrot.lane.b32.xlu0 %v163, 12
    %v207 = vpop.permute.xlu0 %206
    %208 = vrot.lane.b32.xlu0 %v164, 12
    %v209 = vpop.permute.xlu0 %208
    %210 = vrot.lane.b32.xlu0 %v165, 12
    %v211 = vpop.permute.xlu0 %210
    %212 = vrot.lane.b32.xlu0 %v166, 12
    %v213 = vpop.permute.xlu0 %212
    %214 = vrot.lane.b32.xlu0 %v167, 12
    %v215 = vpop.permute.xlu0 %214
    %vm232 = vcmask 97280
    %v233 = vsel %vm232, %v80, %v185
    %v234 = vsel %vm232, %v81, %v187
    %v235 = vsel %vm232, %v82, %v189
    %v236 = vsel %vm232, %v83, %v191
    %v237 = vsel %vm232, %v84, %v193
    %v238 = vsel %vm232, %v85, %v195
    %v239 = vsel %vm232, %v86, %v197
    %v240 = vsel %vm232, %v87, %v199
    %v241 = vsel %vm232, %v88, %v201
    %v242 = vsel %vm232, %v89, %v203
    %v243 = vsel %vm232, %v90, %v205
    %v244 = vsel %vm232, %v91, %v207
    %v245 = vsel %vm232, %v92, %v209
    %v246 = vsel %vm232, %v93, %v211
    %v247 = vsel %vm232, %v94, %v213
    %v248 = vsel %vm232, %v95, %v215
    %vm249 = vcmask 130048
    %250 = vst.msk [vmem:[#allocation2] sm:$0xff] %vm249, %v233
    %251 = vst.msk [vmem:[#allocation2 + $0x8] sm:$0xff] %vm249, %v234
    %252 = vst.msk [vmem:[#allocation2 + $0x10] sm:$0xff] %vm249, %v235
    %253 = vst.msk [vmem:[#allocation2 + $0x18] sm:$0xff] %vm249, %v236
    %254 = vst.msk [vmem:[#allocation2 + $0x20] sm:$0xff] %vm249, %v237
    %255 = vst.msk [vmem:[#allocation2 + $0x28] sm:$0xff] %vm249, %v238
    %256 = vst.msk [vmem:[#allocation2 + $0x30] sm:$0xff] %vm249, %v239
    %257 = vst.msk [vmem:[#allocation2 + $0x38] sm:$0xff] %vm249, %v240
    %258 = vst.msk [vmem:[#allocation2 + $0x40] sm:$0xff] %vm249, %v241
    %259 = vst.msk [vmem:[#allocation2 + $0x48] sm:$0xff] %vm249, %v242
    %260 = vst.msk [vmem:[#allocation2 + $0x50] sm:$0xff] %vm249, %v243
    %261 = vst.msk [vmem:[#allocation2 + $0x58] sm:$0xff] %vm249, %v244
    %262 = vst.msk [vmem:[#allocation2 + $0x60] sm:$0xff] %vm249, %v245
    %263 = vst.msk [vmem:[#allocation2 + $0x68] sm:$0xff] %vm249, %v246
    %264 = vst.msk [vmem:[#allocation2 + $0x70] sm:$0xff] %vm249, %v247
    %265 = vst.msk [vmem:[#allocation2 + $0x78] sm:$0xff] %vm249, %v248
    // Predicated region
    $region26: #{downsampler_block.3} parent=1 // pred_check
      _
    $region27: #{downsampler_block.3} parent=1 // pred_check_branch
      %267 = sbr.rel (0) target = $region29
    $region28: #{downsampler_block.3} parent=1 // pred_region
      %269 = vsyncadd [#allocation3], 0
      %s270 = sshll.u32 [#allocation2], 4
      %s271 = int_to_ptr.vmem [resolvable:$true] %s270
      %s272 = sshll.u32 %s6, 4
      %s273 = int_to_ptr.hbm [resolvable:$true] %s272
      %278 = dma.vmem_to_hbm [thread:$0]  %s271, 2048, %s273, [#allocation3], 128, 128, 8
    $region29: #{downsampler_block.3} parent=1 // pred_fallthru
      _
    // Predicated region
    $region30: #{downsampler_block.3} parent=1 // pred_check
      _
    $region31: #{downsampler_block.3} parent=1 // pred_check_branch
      %280 = sbr.rel (0) target = $region33
    $region32: #{downsampler_block.3} parent=1 // pred_region
      %282 = dma.done [#allocation3], 2048
    $region33: #{downsampler_block.3} parent=1 // pred_fallthru
      _
    %283 = vsyncpa [#allocation3], 1

// kernel: downsampler_block.2
$region0: #{downsampler_block.2}
  #allocation0 [shape = 'u32[]', space=smem, size = 0x4, offset = 0x4, fixed_abs, tag = 'smem constant byte address 0x4 - core index']
  #allocation1 [shape = 'u32[72,128]{1,0:T(1,128)}', space=vmem, size = 0x9000, scoped, tag = 'internal scratch']
  %s0 = inlined_call_operand.vmem [shape: f32[16,9,4], index: 0, kind: input, shape index: {}]
  %s1 = inlined_call_operand.vmem [shape: f32[16,9,4], index: 1, kind: input, shape index: {}]
  %s2 = inlined_call_operand.vmem [shape: f32[16,9,4], index: 2, kind: input, shape index: {}]
  %s3 = inlined_call_operand.vmem [shape: f32[16,9,4], index: 3, kind: input, shape index: {}]
  %s4 = inlined_call_operand.vmem [shape: f32[16,9,4], index: 4, kind: input, shape index: {}]
  %s5 = inlined_call_operand.vmem [shape: f32[16,9,4], index: 5, kind: input, shape index: {}]
  %s6 = inlined_call_operand.vmem [shape: f32[9,4,12], index: 6, kind: input, shape index: {}]
  %s7 = inlined_call_operand.vmem [shape: f32[1,12], index: 7, kind: input, shape index: {}]
  %s8 = inlined_call_operand.vmem [shape: f32[128,12], index: 8, kind: output, shape index: {0}]
  %s9 = inlined_call_operand.vmem [shape: f32[128,4], index: 9, kind: output, shape index: {1}]
  %s10 = inlined_call_operand.vmem [shape: f32[1,1,12], index: 10, kind: output, shape index: {2}]
  %s11 = inlined_call_operand.vmem [shape: f32[1,1,12], index: 11, kind: output, shape index: {3}]
  %s12 = inlined_call_operand.vmem [shape: f32[1,1,4], index: 12, kind: output, shape index: {4}]
  %s13 = inlined_call_operand.vmem [shape: f32[1,1,4], index: 13, kind: output, shape index: {5}]
  %14 = xla_tuple %s8, %s9, %s10, %s11, %s12, %s13
  %s15 = sld [smem:[#allocation0]]
  $region82: #{downsampler_block.2} parent=0
    _
  %s17 = ssub.s32 1, %s15
  %s18 = scalar_select 0, %s17, %s15
  // Predicated region
  $region2: #{downsampler_block.2} parent=0 // pred_check
    _
  $region3: #{downsampler_block.2} parent=0 // pred_check_branch
    %20 = sbr.rel (0) target = $region5
  $region4: #{downsampler_block.2} parent=0 // pred_region
    _
  $region5: #{downsampler_block.2} parent=0 // pred_fallthru
    _
  // Predicated region
  $region6: #{downsampler_block.2} parent=0 // pred_check
    _
  $region7: #{downsampler_block.2} parent=0 // pred_check_branch
    %22 = sbr.rel (0) target = $region9
  $region8: #{downsampler_block.2} parent=0 // pred_region
    _
  $region9: #{downsampler_block.2} parent=0 // pred_fallthru
    _
  // Predicated region
  $region10: #{downsampler_block.2} parent=0 // pred_check
    _
  $region11: #{downsampler_block.2} parent=0 // pred_check_branch
    %24 = sbr.rel (0) target = $region13
  $region12: #{downsampler_block.2} parent=0 // pred_region
    _
  $region13: #{downsampler_block.2} parent=0 // pred_fallthru
    _
  // Predicated region
  $region14: #{downsampler_block.2} parent=0 // pred_check
    _
  $region15: #{downsampler_block.2} parent=0 // pred_check_branch
    %26 = sbr.rel (0) target = $region17
  $region16: #{downsampler_block.2} parent=0 // pred_region
    _
  $region17: #{downsampler_block.2} parent=0 // pred_fallthru
    _
  // Predicated region
  $region18: #{downsampler_block.2} parent=0 // pred_check
    _
  $region19: #{downsampler_block.2} parent=0 // pred_check_branch
    %28 = sbr.rel (0) target = $region21
  $region20: #{downsampler_block.2} parent=0 // pred_region
    _
  $region21: #{downsampler_block.2} parent=0 // pred_fallthru
    _
  // Predicated region
  $region22: #{downsampler_block.2} parent=0 // pred_check
    _
  $region23: #{downsampler_block.2} parent=0 // pred_check_branch
    %30 = sbr.rel (0) target = $region25
  $region24: #{downsampler_block.2} parent=0 // pred_region
    _
  $region25: #{downsampler_block.2} parent=0 // pred_fallthru
    _
  // Predicated region
  $region26: #{downsampler_block.2} parent=0 // pred_check
    _
  $region27: #{downsampler_block.2} parent=0 // pred_check_branch
    %32 = sbr.rel (0) target = $region29
  $region28: #{downsampler_block.2} parent=0 // pred_region
    _
  $region29: #{downsampler_block.2} parent=0 // pred_fallthru
    _
  // Predicated region
  $region30: #{downsampler_block.2} parent=0 // pred_check
    _
  $region31: #{downsampler_block.2} parent=0 // pred_check_branch
    %34 = sbr.rel (0) target = $region33
  $region32: #{downsampler_block.2} parent=0 // pred_region
    _
  $region33: #{downsampler_block.2} parent=0 // pred_fallthru
    _
  %v35 = vld [vmem:[%s0] sm:$0xff]
  %v36 = vld [vmem:[%s0 + $0x8] sm:$0x1]
  %v37 = vld [vmem:[%s0 + $0x10] sm:$0xff]
  %v38 = vld [vmem:[%s0 + $0x18] sm:$0x1]
  %v39 = vld [vmem:[%s0 + $0x20] sm:$0xff]
  %v40 = vld [vmem:[%s0 + $0x28] sm:$0x1]
  %v41 = vld [vmem:[%s0 + $0x30] sm:$0xff]
  %v42 = vld [vmem:[%s0 + $0x38] sm:$0x1]
  %v43 = vld [vmem:[%s0 + $0x40] sm:$0xff]
  %v44 = vld [vmem:[%s0 + $0x48] sm:$0x1]
  %v45 = vld [vmem:[%s0 + $0x50] sm:$0xff]
  %v46 = vld [vmem:[%s0 + $0x58] sm:$0x1]
  %v47 = vld [vmem:[%s0 + $0x60] sm:$0xff]
  %v48 = vld [vmem:[%s0 + $0x68] sm:$0x1]
  %v49 = vld [vmem:[%s0 + $0x70] sm:$0xff]
  %v50 = vld [vmem:[%s0 + $0x78] sm:$0x1]
  %v51 = vld [vmem:[%s0 + $0x80] sm:$0xff]
  %v52 = vld [vmem:[%s0 + $0x88] sm:$0x1]
  %v53 = vld [vmem:[%s0 + $0x90] sm:$0xff]
  %v54 = vld [vmem:[%s0 + $0x98] sm:$0x1]
  %v55 = vld [vmem:[%s0 + $0xa0] sm:$0xff]
  %v56 = vld [vmem:[%s0 + $0xa8] sm:$0x1]
  %v57 = vld [vmem:[%s0 + $0xb0] sm:$0xff]
  %v58 = vld [vmem:[%s0 + $0xb8] sm:$0x1]
  %v59 = vld [vmem:[%s0 + $0xc0] sm:$0xff]
  %v60 = vld [vmem:[%s0 + $0xc8] sm:$0x1]
  %v61 = vld [vmem:[%s0 + $0xd0] sm:$0xff]
  %v62 = vld [vmem:[%s0 + $0xd8] sm:$0x1]
  %v63 = vld [vmem:[%s0 + $0xe0] sm:$0xff]
  %v64 = vld [vmem:[%s0 + $0xe8] sm:$0x1]
  %v65 = vld [vmem:[%s0 + $0xf0] sm:$0xff]
  %v66 = vld [vmem:[%s0 + $0xf8] sm:$0x1]
  %v67 = vld [vmem:[%s1] sm:$0xff]
  %v68 = vld [vmem:[%s1 + $0x8] sm:$0x1]
  %v69 = vld [vmem:[%s1 + $0x10] sm:$0xff]
  %v70 = vld [vmem:[%s1 + $0x18] sm:$0x1]
  %v71 = vld [vmem:[%s1 + $0x20] sm:$0xff]
  %v72 = vld [vmem:[%s1 + $0x28] sm:$0x1]
  %v73 = vld [vmem:[%s1 + $0x30] sm:$0xff]
  %v74 = vld [vmem:[%s1 + $0x38] sm:$0x1]
  %v75 = vld [vmem:[%s1 + $0x40] sm:$0xff]
  %v76 = vld [vmem:[%s1 + $0x48] sm:$0x1]
  %v77 = vld [vmem:[%s1 + $0x50] sm:$0xff]
  %v78 = vld [vmem:[%s1 + $0x58] sm:$0x1]
  %v79 = vld [vmem:[%s1 + $0x60] sm:$0xff]
  %v80 = vld [vmem:[%s1 + $0x68] sm:$0x1]
  %v81 = vld [vmem:[%s1 + $0x70] sm:$0xff]
  %v82 = vld [vmem:[%s1 + $0x78] sm:$0x1]
  %v83 = vld [vmem:[%s1 + $0x80] sm:$0xff]
  %v84 = vld [vmem:[%s1 + $0x88] sm:$0x1]
  %v85 = vld [vmem:[%s1 + $0x90] sm:$0xff]
  %v86 = vld [vmem:[%s1 + $0x98] sm:$0x1]
  %v87 = vld [vmem:[%s1 + $0xa0] sm:$0xff]
  %v88 = vld [vmem:[%s1 + $0xa8] sm:$0x1]
  %v89 = vld [vmem:[%s1 + $0xb0] sm:$0xff]
  %v90 = vld [vmem:[%s1 + $0xb8] sm:$0x1]
  %v91 = vld [vmem:[%s1 + $0xc0] sm:$0xff]
  %v92 = vld [vmem:[%s1 + $0xc8] sm:$0x1]
  %v93 = vld [vmem:[%s1 + $0xd0] sm:$0xff]
  %v94 = vld [vmem:[%s1 + $0xd8] sm:$0x1]
  %v95 = vld [vmem:[%s1 + $0xe0] sm:$0xff]
  %v96 = vld [vmem:[%s1 + $0xe8] sm:$0x1]
  %v97 = vld [vmem:[%s1 + $0xf0] sm:$0xff]
  %v98 = vld [vmem:[%s1 + $0xf8] sm:$0x1]
  %v99 = vld [vmem:[%s2] sm:$0xff]
  %v100 = vld [vmem:[%s2 + $0x10] sm:$0xff]
  %v101 = vld [vmem:[%s2 + $0x20] sm:$0xff]
  %v102 = vld [vmem:[%s2 + $0x30] sm:$0xff]
  %v103 = vld [vmem:[%s2 + $0x40] sm:$0xff]
  %v104 = vld [vmem:[%s2 + $0x50] sm:$0xff]
  %v105 = vld [vmem:[%s2 + $0x60] sm:$0xff]
  %v106 = vld [vmem:[%s2 + $0x70] sm:$0xff]
  %v107 = vld [vmem:[%s2 + $0x80] sm:$0xff]
  %v108 = vld [vmem:[%s2 + $0x90] sm:$0xff]
  %v109 = vld [vmem:[%s2 + $0xa0] sm:$0xff]
  %v110 = vld [vmem:[%s2 + $0xb0] sm:$0xff]
  %v111 = vld [vmem:[%s2 + $0xc0] sm:$0xff]
  %v112 = vld [vmem:[%s2 + $0xd0] sm:$0xff]
  %v113 = vld [vmem:[%s2 + $0xe0] sm:$0xff]
  %v114 = vld [vmem:[%s2 + $0xf0] sm:$0xff]
  %v115 = vld [vmem:[%s3] sm:$0xff]
  %v116 = vld [vmem:[%s3 + $0x10] sm:$0xff]
  %v117 = vld [vmem:[%s3 + $0x20] sm:$0xff]
  %v118 = vld [vmem:[%s3 + $0x30] sm:$0xff]
  %v119 = vld [vmem:[%s3 + $0x40] sm:$0xff]
  %v120 = vld [vmem:[%s3 + $0x50] sm:$0xff]
  %v121 = vld [vmem:[%s3 + $0x60] sm:$0xff]
  %v122 = vld [vmem:[%s3 + $0x70] sm:$0xff]
  %v123 = vld [vmem:[%s3 + $0x80] sm:$0xff]
  %v124 = vld [vmem:[%s3 + $0x90] sm:$0xff]
  %v125 = vld [vmem:[%s3 + $0xa0] sm:$0xff]
  %v126 = vld [vmem:[%s3 + $0xb0] sm:$0xff]
  %v127 = vld [vmem:[%s3 + $0xc0] sm:$0xff]
  %v128 = vld [vmem:[%s3 + $0xd0] sm:$0xff]
  %v129 = vld [vmem:[%s3 + $0xe0] sm:$0xff]
  %v130 = vld [vmem:[%s3 + $0xf0] sm:$0xff]
  %v131 = vld [vmem:[%s4] sm:$0xff]
  %v132 = vld [vmem:[%s4 + $0x8] sm:$0x1]
  %v133 = vld [vmem:[%s4 + $0x10] sm:$0xff]
  %v134 = vld [vmem:[%s4 + $0x18] sm:$0x1]
  %v135 = vld [vmem:[%s4 + $0x20] sm:$0xff]
  %v136 = vld [vmem:[%s4 + $0x28] sm:$0x1]
  %v137 = vld [vmem:[%s4 + $0x30] sm:$0xff]
  %v138 = vld [vmem:[%s4 + $0x38] sm:$0x1]
  %v139 = vld [vmem:[%s4 + $0x40] sm:$0xff]
  %v140 = vld [vmem:[%s4 + $0x48] sm:$0x1]
  %v141 = vld [vmem:[%s4 + $0x50] sm:$0xff]
  %v142 = vld [vmem:[%s4 + $0x58] sm:$0x1]
  %v143 = vld [vmem:[%s4 + $0x60] sm:$0xff]
  %v144 = vld [vmem:[%s4 + $0x68] sm:$0x1]
  %v145 = vld [vmem:[%s4 + $0x70] sm:$0xff]
  %v146 = vld [vmem:[%s4 + $0x78] sm:$0x1]
  %v147 = vld [vmem:[%s4 + $0x80] sm:$0xff]
  %v148 = vld [vmem:[%s4 + $0x88] sm:$0x1]
  %v149 = vld [vmem:[%s4 + $0x90] sm:$0xff]
  %v150 = vld [vmem:[%s4 + $0x98] sm:$0x1]
  %v151 = vld [vmem:[%s4 + $0xa0] sm:$0xff]
  %v152 = vld [vmem:[%s4 + $0xa8] sm:$0x1]
  %v153 = vld [vmem:[%s4 + $0xb0] sm:$0xff]
  %v154 = vld [vmem:[%s4 + $0xb8] sm:$0x1]
  %v155 = vld [vmem:[%s4 + $0xc0] sm:$0xff]
  %v156 = vld [vmem:[%s4 + $0xc8] sm:$0x1]
  %v157 = vld [vmem:[%s4 + $0xd0] sm:$0xff]
  %v158 = vld [vmem:[%s4 + $0xd8] sm:$0x1]
  %v159 = vld [vmem:[%s4 + $0xe0] sm:$0xff]
  %v160 = vld [vmem:[%s4 + $0xe8] sm:$0x1]
  %v161 = vld [vmem:[%s4 + $0xf0] sm:$0xff]
  %v162 = vld [vmem:[%s4 + $0xf8] sm:$0x1]
  %v163 = vld [vmem:[%s5] sm:$0xff]
  %v164 = vld [vmem:[%s5 + $0x10] sm:$0xff]
  %v165 = vld [vmem:[%s5 + $0x20] sm:$0xff]
  %v166 = vld [vmem:[%s5 + $0x30] sm:$0xff]
  %v167 = vld [vmem:[%s5 + $0x40] sm:$0xff]
  %v168 = vld [vmem:[%s5 + $0x50] sm:$0xff]
  %v169 = vld [vmem:[%s5 + $0x60] sm:$0xff]
  %v170 = vld [vmem:[%s5 + $0x70] sm:$0xff]
  %v171 = vld [vmem:[%s5 + $0x80] sm:$0xff]
  %v172 = vld [vmem:[%s5 + $0x90] sm:$0xff]
  %v173 = vld [vmem:[%s5 + $0xa0] sm:$0xff]
  %v174 = vld [vmem:[%s5 + $0xb0] sm:$0xff]
  %v175 = vld [vmem:[%s5 + $0xc0] sm:$0xff]
  %v176 = vld [vmem:[%s5 + $0xd0] sm:$0xff]
  %v177 = vld [vmem:[%s5 + $0xe0] sm:$0xff]
  %v178 = vld [vmem:[%s5 + $0xf0] sm:$0xff]
  %vm211 = vcmask 1046528
  %v212 = vrot.slane %v35, 1
  %v213 = vrot.slane %v36, 1
  %v214 = vsel %vm211, %v212, %v213
  %v215 = vrot.slane %v37, 1
  %v216 = vrot.slane %v38, 1
  %v217 = vsel %vm211, %v215, %v216
  %v218 = vrot.slane %v39, 1
  %v219 = vrot.slane %v40, 1
  %v220 = vsel %vm211, %v218, %v219
  %v221 = vrot.slane %v41, 1
  %v222 = vrot.slane %v42, 1
  %v223 = vsel %vm211, %v221, %v222
  %v224 = vrot.slane %v43, 1
  %v225 = vrot.slane %v44, 1
  %v226 = vsel %vm211, %v224, %v225
  %v227 = vrot.slane %v45, 1
  %v228 = vrot.slane %v46, 1
  %v229 = vsel %vm211, %v227, %v228
  %v230 = vrot.slane %v47, 1
  %v231 = vrot.slane %v48, 1
  %v232 = vsel %vm211, %v230, %v231
  %v233 = vrot.slane %v49, 1
  %v234 = vrot.slane %v50, 1
  %v235 = vsel %vm211, %v233, %v234
  %v236 = vrot.slane %v51, 1
  %v237 = vrot.slane %v52, 1
  %v238 = vsel %vm211, %v236, %v237
  %v239 = vrot.slane %v53, 1
  %v240 = vrot.slane %v54, 1
  %v241 = vsel %vm211, %v239, %v240
  %v242 = vrot.slane %v55, 1
  %v243 = vrot.slane %v56, 1
  %v244 = vsel %vm211, %v242, %v243
  %v245 = vrot.slane %v57, 1
  %v246 = vrot.slane %v58, 1
  %v247 = vsel %vm211, %v245, %v246
  %v248 = vrot.slane %v59, 1
  %v249 = vrot.slane %v60, 1
  %v250 = vsel %vm211, %v248, %v249
  %v251 = vrot.slane %v61, 1
  %v252 = vrot.slane %v62, 1
  %v253 = vsel %vm211, %v251, %v252
  %v254 = vrot.slane %v63, 1
  %v255 = vrot.slane %v64, 1
  %v256 = vsel %vm211, %v254, %v255
  %v257 = vrot.slane %v65, 1
  %v258 = vrot.slane %v66, 1
  %v259 = vsel %vm211, %v257, %v258
  %v292 = vrot.slane %v131, 1
  %v293 = vrot.slane %v132, 1
  %v294 = vsel %vm211, %v292, %v293
  %v295 = vrot.slane %v133, 1
  %v296 = vrot.slane %v134, 1
  %v297 = vsel %vm211, %v295, %v296
  %v298 = vrot.slane %v135, 1
  %v299 = vrot.slane %v136, 1
  %v300 = vsel %vm211, %v298, %v299
  %v301 = vrot.slane %v137, 1
  %v302 = vrot.slane %v138, 1
  %v303 = vsel %vm211, %v301, %v302
  %v304 = vrot.slane %v139, 1
  %v305 = vrot.slane %v140, 1
  %v306 = vsel %vm211, %v304, %v305
  %v307 = vrot.slane %v141, 1
  %v308 = vrot.slane %v142, 1
  %v309 = vsel %vm211, %v307, %v308
  %v310 = vrot.slane %v143, 1
  %v311 = vrot.slane %v144, 1
  %v312 = vsel %vm211, %v310, %v311
  %v313 = vrot.slane %v145, 1
  %v314 = vrot.slane %v146, 1
  %v315 = vsel %vm211, %v313, %v314
  %v316 = vrot.slane %v147, 1
  %v317 = vrot.slane %v148, 1
  %v318 = vsel %vm211, %v316, %v317
  %v319 = vrot.slane %v149, 1
  %v320 = vrot.slane %v150, 1
  %v321 = vsel %vm211, %v319, %v320
  %v322 = vrot.slane %v151, 1
  %v323 = vrot.slane %v152, 1
  %v324 = vsel %vm211, %v322, %v323
  %v325 = vrot.slane %v153, 1
  %v326 = vrot.slane %v154, 1
  %v327 = vsel %vm211, %v325, %v326
  %v328 = vrot.slane %v155, 1
  %v329 = vrot.slane %v156, 1
  %v330 = vsel %vm211, %v328, %v329
  %v331 = vrot.slane %v157, 1
  %v332 = vrot.slane %v158, 1
  %v333 = vsel %vm211, %v331, %v332
  %v334 = vrot.slane %v159, 1
  %v335 = vrot.slane %v160, 1
  %v336 = vsel %vm211, %v334, %v335
  %v337 = vrot.slane %v161, 1
  %v338 = vrot.slane %v162, 1
  %v339 = vsel %vm211, %v337, %v338
  %v388 = vrot.slane %v67, 1
  %v389 = vrot.slane %v68, 1
  %v390 = vsel %vm211, %v388, %v389
  %v391 = vrot.slane %v69, 1
  %v392 = vrot.slane %v70, 1
  %v393 = vsel %vm211, %v391, %v392
  %v394 = vrot.slane %v71, 1
  %v395 = vrot.slane %v72, 1
  %v396 = vsel %vm211, %v394, %v395
  %v397 = vrot.slane %v73, 1
  %v398 = vrot.slane %v74, 1
  %v399 = vsel %vm211, %v397, %v398
  %v400 = vrot.slane %v75, 1
  %v401 = vrot.slane %v76, 1
  %v402 = vsel %vm211, %v400, %v401
  %v403 = vrot.slane %v77, 1
  %v404 = vrot.slane %v78, 1
  %v405 = vsel %vm211, %v403, %v404
  %v406 = vrot.slane %v79, 1
  %v407 = vrot.slane %v80, 1
  %v408 = vsel %vm211, %v406, %v407
  %v409 = vrot.slane %v81, 1
  %v410 = vrot.slane %v82, 1
  %v411 = vsel %vm211, %v409, %v410
  %v412 = vrot.slane %v83, 1
  %v413 = vrot.slane %v84, 1
  %v414 = vsel %vm211, %v412, %v413
  %v415 = vrot.slane %v85, 1
  %v416 = vrot.slane %v86, 1
  %v417 = vsel %vm211, %v415, %v416
  %v418 = vrot.slane %v87, 1
  %v419 = vrot.slane %v88, 1
  %v420 = vsel %vm211, %v418, %v419
  %v421 = vrot.slane %v89, 1
  %v422 = vrot.slane %v90, 1
  %v423 = vsel %vm211, %v421, %v422
  %v424 = vrot.slane %v91, 1
  %v425 = vrot.slane %v92, 1
  %v426 = vsel %vm211, %v424, %v425
  %v427 = vrot.slane %v93, 1
  %v428 = vrot.slane %v94, 1
  %v429 = vsel %vm211, %v427, %v428
  %v430 = vrot.slane %v95, 1
  %v431 = vrot.slane %v96, 1
  %v432 = vsel %vm211, %v430, %v431
  %v433 = vrot.slane %v97, 1
  %v434 = vrot.slane %v98, 1
  %v435 = vsel %vm211, %v433, %v434
  %v452 = vld [vmem:[%s6] sm:$0xf]
  %v453 = vld [vmem:[%s6 + $0x4] sm:$0xf]
  %v454 = vld [vmem:[%s6 + $0x8] sm:$0xf]
  %v455 = vld [vmem:[%s6 + $0xc] sm:$0xf]
  %v456 = vld [vmem:[%s6 + $0x10] sm:$0xf]
  %v457 = vld [vmem:[%s6 + $0x14] sm:$0xf]
  %v458 = vld [vmem:[%s6 + $0x18] sm:$0xf]
  %v459 = vld [vmem:[%s6 + $0x1c] sm:$0xf]
  %v460 = vld [vmem:[%s6 + $0x20] sm:$0xf]
  %vm461 = vcmask 31744
  %v463 = vsel %vm461, %v99, 0
  %v466 = vsel %vm461, %v100, 0
  %v469 = vsel %vm461, %v101, 0
  %v472 = vsel %vm461, %v102, 0
  %v475 = vsel %vm461, %v103, 0
  %v478 = vsel %vm461, %v104, 0
  %v481 = vsel %vm461, %v105, 0
  %v484 = vsel %vm461, %v106, 0
  %v487 = vsel %vm461, %v107, 0
  %v490 = vsel %vm461, %v108, 0
  %v493 = vsel %vm461, %v109, 0
  %v496 = vsel %vm461, %v110, 0
  %v499 = vsel %vm461, %v111, 0
  %v502 = vsel %vm461, %v112, 0
  %v505 = vsel %vm461, %v113, 0
  %v508 = vsel %vm461, %v114, 0
  %vm510 = vcmask 1043456
  %v512 = vsel %vm510, %v453, 0
  %514 = vmatpush.msra.mxu0 0.0
  %515 = vmatpush.msra.mxu0 0.0
  %516 = vmatpush.msra.mxu0 0.0
  %517 = vmatpush.msra.mxu0 0.0
  %518 = vmatpush.msra.mxu0 0.0
  %519 = vmatpush.msra.mxu0 0.0
  %520 = vmatpush.msra.mxu0 0.0
  %521 = vmatpush.msra.mxu0 0.0
  %522 = vmatpush.msra.mxu0 0.0
  %523 = vmatpush.msra.mxu0 0.0
  %524 = vmatpush.msra.mxu0 0.0
  %525 = vmatpush.msra.mxu0 0.0
  %526 = vmatpush.msra.mxu0 0.0
  %527 = vmatpush.msra.mxu0 0.0
  %528 = vmatpush.msra.mxu0 0.0
  %529 = vmatpush.msra.mxu0 %v512
  %530 = vmatmul.f32.gmra.mxu0 %v463
  %v531 = vpop.f32.mrf.mxu0
  %v532 = vadd.f32 0.0, %v531
  %533 = vmatmul.f32.gmra.mxu0 %v466
  %v534 = vpop.f32.mrf.mxu0
  %v535 = vadd.f32 0.0, %v534
  %536 = vmatmul.f32.gmra.mxu0 %v469
  %v537 = vpop.f32.mrf.mxu0
  %v538 = vadd.f32 0.0, %v537
  %539 = vmatmul.f32.gmra.mxu0 %v472
  %v540 = vpop.f32.mrf.mxu0
  %v541 = vadd.f32 0.0, %v540
  %542 = vmatmul.f32.gmra.mxu0 %v475
  %v543 = vpop.f32.mrf.mxu0
  %v544 = vadd.f32 0.0, %v543
  %545 = vmatmul.f32.gmra.mxu0 %v478
  %v546 = vpop.f32.mrf.mxu0
  %v547 = vadd.f32 0.0, %v546
  %548 = vmatmul.f32.gmra.mxu0 %v481
  %v549 = vpop.f32.mrf.mxu0
  %v550 = vadd.f32 0.0, %v549
  %551 = vmatmul.f32.gmra.mxu0 %v484
  %v552 = vpop.f32.mrf.mxu0
  %v553 = vadd.f32 0.0, %v552
  %554 = vmatmul.f32.gmra.mxu0 %v487
  %v555 = vpop.f32.mrf.mxu0
  %v556 = vadd.f32 0.0, %v555
  %557 = vmatmul.f32.gmra.mxu0 %v490
  %v558 = vpop.f32.mrf.mxu0
  %v559 = vadd.f32 0.0, %v558
  %560 = vmatmul.f32.gmra.mxu0 %v493
  %v561 = vpop.f32.mrf.mxu0
  %v562 = vadd.f32 0.0, %v561
  %563 = vmatmul.f32.gmra.mxu0 %v496
  %v564 = vpop.f32.mrf.mxu0
  %v565 = vadd.f32 0.0, %v564
  %566 = vmatmul.f32.gmra.mxu0 %v499
  %v567 = vpop.f32.mrf.mxu0
  %v568 = vadd.f32 0.0, %v567
  %569 = vmatmul.f32.gmra.mxu0 %v502
  %v570 = vpop.f32.mrf.mxu0
  %v571 = vadd.f32 0.0, %v570
  %572 = vmatmul.f32.gmra.mxu0 %v505
  %v573 = vpop.f32.mrf.mxu0
  %v574 = vadd.f32 0.0, %v573
  %575 = vmatmul.f32.gmra.mxu0 %v508
  %v576 = vpop.f32.mrf.mxu0
  %v577 = vadd.f32 0.0, %v576
  %578 = vdwg.mxu0
  %v579 = vsel %vm461, %v35, 0
  %v581 = vsel %vm461, %v37, 0
  %v583 = vsel %vm461, %v39, 0
  %v585 = vsel %vm461, %v41, 0
  %v587 = vsel %vm461, %v43, 0
  %v589 = vsel %vm461, %v45, 0
  %v591 = vsel %vm461, %v47, 0
  %v593 = vsel %vm461, %v49, 0
  %v595 = vsel %vm461, %v51, 0
  %v597 = vsel %vm461, %v53, 0
  %v599 = vsel %vm461, %v55, 0
  %v601 = vsel %vm461, %v57, 0
  %v603 = vsel %vm461, %v59, 0
  %v605 = vsel %vm461, %v61, 0
  %v607 = vsel %vm461, %v63, 0
  %v609 = vsel %vm461, %v65, 0
  %v612 = vsel %vm510, %v452, 0
  %614 = vmatpush.msra.mxu0 0.0
  %615 = vmatpush.msra.mxu0 0.0
  %616 = vmatpush.msra.mxu0 0.0
  %617 = vmatpush.msra.mxu0 0.0
  %618 = vmatpush.msra.mxu0 0.0
  %619 = vmatpush.msra.mxu0 0.0
  %620 = vmatpush.msra.mxu0 0.0
  %621 = vmatpush.msra.mxu0 0.0
  %622 = vmatpush.msra.mxu0 0.0
  %623 = vmatpush.msra.mxu0 0.0
  %624 = vmatpush.msra.mxu0 0.0
  %625 = vmatpush.msra.mxu0 0.0
  %626 = vmatpush.msra.mxu0 0.0
  %627 = vmatpush.msra.mxu0 0.0
  %628 = vmatpush.msra.mxu0 0.0
  %629 = vmatpush.msra.mxu0 %v612
  %630 = vmatmul.f32.gmra.mxu0 %v579
  %v631 = vpop.f32.mrf.mxu0
  %v632 = vadd.f32 %v532, %v631
  %633 = vmatmul.f32.gmra.mxu0 %v581
  %v634 = vpop.f32.mrf.mxu0
  %v635 = vadd.f32 %v535, %v634
  %636 = vmatmul.f32.gmra.mxu0 %v583
  %v637 = vpop.f32.mrf.mxu0
  %v638 = vadd.f32 %v538, %v637
  %639 = vmatmul.f32.gmra.mxu0 %v585
  %v640 = vpop.f32.mrf.mxu0
  %v641 = vadd.f32 %v541, %v640
  %642 = vmatmul.f32.gmra.mxu0 %v587
  %v643 = vpop.f32.mrf.mxu0
  %v644 = vadd.f32 %v544, %v643
  %645 = vmatmul.f32.gmra.mxu0 %v589
  %v646 = vpop.f32.mrf.mxu0
  %v647 = vadd.f32 %v547, %v646
  %648 = vmatmul.f32.gmra.mxu0 %v591
  %v649 = vpop.f32.mrf.mxu0
  %v650 = vadd.f32 %v550, %v649
  %651 = vmatmul.f32.gmra.mxu0 %v593
  %v652 = vpop.f32.mrf.mxu0
  %v653 = vadd.f32 %v553, %v652
  %654 = vmatmul.f32.gmra.mxu0 %v595
  %v655 = vpop.f32.mrf.mxu0
  %v656 = vadd.f32 %v556, %v655
  %657 = vmatmul.f32.gmra.mxu0 %v597
  %v658 = vpop.f32.mrf.mxu0
  %v659 = vadd.f32 %v559, %v658
  %660 = vmatmul.f32.gmra.mxu0 %v599
  %v661 = vpop.f32.mrf.mxu0
  %v662 = vadd.f32 %v562, %v661
  %663 = vmatmul.f32.gmra.mxu0 %v601
  %v664 = vpop.f32.mrf.mxu0
  %v665 = vadd.f32 %v565, %v664
  %666 = vmatmul.f32.gmra.mxu0 %v603
  %v667 = vpop.f32.mrf.mxu0
  %v668 = vadd.f32 %v568, %v667
  %669 = vmatmul.f32.gmra.mxu0 %v605
  %v670 = vpop.f32.mrf.mxu0
  %v671 = vadd.f32 %v571, %v670
  %672 = vmatmul.f32.gmra.mxu0 %v607
  %v673 = vpop.f32.mrf.mxu0
  %v674 = vadd.f32 %v574, %v673
  %675 = vmatmul.f32.gmra.mxu0 %v609
  %v676 = vpop.f32.mrf.mxu0
  %v677 = vadd.f32 %v577, %v676
  %678 = vdwg.mxu0
  %v679 = vsel %vm461, %v214, 0
  %v681 = vsel %vm461, %v217, 0
  %v683 = vsel %vm461, %v220, 0
  %v685 = vsel %vm461, %v223, 0
  %v687 = vsel %vm461, %v226, 0
  %v689 = vsel %vm461, %v229, 0
  %v691 = vsel %vm461, %v232, 0
  %v693 = vsel %vm461, %v235, 0
  %v695 = vsel %vm461, %v238, 0
  %v697 = vsel %vm461, %v241, 0
  %v699 = vsel %vm461, %v244, 0
  %v701 = vsel %vm461, %v247, 0
  %v703 = vsel %vm461, %v250, 0
  %v705 = vsel %vm461, %v253, 0
  %v707 = vsel %vm461, %v256, 0
  %v709 = vsel %vm461, %v259, 0
  %v712 = vsel %vm510, %v454, 0
  %714 = vmatpush.msra.mxu0 0.0
  %715 = vmatpush.msra.mxu0 0.0
  %716 = vmatpush.msra.mxu0 0.0
  %717 = vmatpush.msra.mxu0 0.0
  %718 = vmatpush.msra.mxu0 0.0
  %719 = vmatpush.msra.mxu0 0.0
  %720 = vmatpush.msra.mxu0 0.0
  %721 = vmatpush.msra.mxu0 0.0
  %722 = vmatpush.msra.mxu0 0.0
  %723 = vmatpush.msra.mxu0 0.0
  %724 = vmatpush.msra.mxu0 0.0
  %725 = vmatpush.msra.mxu0 0.0
  %726 = vmatpush.msra.mxu0 0.0
  %727 = vmatpush.msra.mxu0 0.0
  %728 = vmatpush.msra.mxu0 0.0
  %729 = vmatpush.msra.mxu0 %v712
  %730 = vmatmul.f32.gmra.mxu0 %v679
  %v731 = vpop.f32.mrf.mxu0
  %v732 = vadd.f32 0.0, %v731
  %733 = vmatmul.f32.gmra.mxu0 %v681
  %v734 = vpop.f32.mrf.mxu0
  %v735 = vadd.f32 0.0, %v734
  %736 = vmatmul.f32.gmra.mxu0 %v683
  %v737 = vpop.f32.mrf.mxu0
  %v738 = vadd.f32 0.0, %v737
  %739 = vmatmul.f32.gmra.mxu0 %v685
  %v740 = vpop.f32.mrf.mxu0
  %v741 = vadd.f32 0.0, %v740
  %742 = vmatmul.f32.gmra.mxu0 %v687
  %v743 = vpop.f32.mrf.mxu0
  %v744 = vadd.f32 0.0, %v743
  %745 = vmatmul.f32.gmra.mxu0 %v689
  %v746 = vpop.f32.mrf.mxu0
  %v747 = vadd.f32 0.0, %v746
  %748 = vmatmul.f32.gmra.mxu0 %v691
  %v749 = vpop.f32.mrf.mxu0
  %v750 = vadd.f32 0.0, %v749
  %751 = vmatmul.f32.gmra.mxu0 %v693
  %v752 = vpop.f32.mrf.mxu0
  %v753 = vadd.f32 0.0, %v752
  %754 = vmatmul.f32.gmra.mxu0 %v695
  %v755 = vpop.f32.mrf.mxu0
  %v756 = vadd.f32 0.0, %v755
  %757 = vmatmul.f32.gmra.mxu0 %v697
  %v758 = vpop.f32.mrf.mxu0
  %v759 = vadd.f32 0.0, %v758
  %760 = vmatmul.f32.gmra.mxu0 %v699
  %v761 = vpop.f32.mrf.mxu0
  %v762 = vadd.f32 0.0, %v761
  %763 = vmatmul.f32.gmra.mxu0 %v701
  %v764 = vpop.f32.mrf.mxu0
  %v765 = vadd.f32 0.0, %v764
  %766 = vmatmul.f32.gmra.mxu0 %v703
  %v767 = vpop.f32.mrf.mxu0
  %v768 = vadd.f32 0.0, %v767
  %769 = vmatmul.f32.gmra.mxu0 %v705
  %v770 = vpop.f32.mrf.mxu0
  %v771 = vadd.f32 0.0, %v770
  %772 = vmatmul.f32.gmra.mxu0 %v707
  %v773 = vpop.f32.mrf.mxu0
  %v774 = vadd.f32 0.0, %v773
  %775 = vmatmul.f32.gmra.mxu0 %v709
  %v776 = vpop.f32.mrf.mxu0
  %v777 = vadd.f32 0.0, %v776
  %778 = vdwg.mxu0
  %v779 = vadd.f32 %v632, %v732
  %v780 = vadd.f32 %v635, %v735
  %v781 = vadd.f32 %v638, %v738
  %v782 = vadd.f32 %v641, %v741
  %v783 = vadd.f32 %v644, %v744
  %v784 = vadd.f32 %v647, %v747
  %v785 = vadd.f32 %v650, %v750
  %v786 = vadd.f32 %v653, %v753
  %v787 = vadd.f32 %v656, %v756
  %v788 = vadd.f32 %v659, %v759
  %v789 = vadd.f32 %v662, %v762
  %v790 = vadd.f32 %v665, %v765
  %v791 = vadd.f32 %v668, %v768
  %v792 = vadd.f32 %v671, %v771
  %v793 = vadd.f32 %v674, %v774
  %v794 = vadd.f32 %v677, %v777
  %v795 = vsel %vm461, %v131, 0
  %v797 = vsel %vm461, %v133, 0
  %v799 = vsel %vm461, %v135, 0
  %v801 = vsel %vm461, %v137, 0
  %v803 = vsel %vm461, %v139, 0
  %v805 = vsel %vm461, %v141, 0
  %v807 = vsel %vm461, %v143, 0
  %v809 = vsel %vm461, %v145, 0
  %v811 = vsel %vm461, %v147, 0
  %v813 = vsel %vm461, %v149, 0
  %v815 = vsel %vm461, %v151, 0
  %v817 = vsel %vm461, %v153, 0
  %v819 = vsel %vm461, %v155, 0
  %v821 = vsel %vm461, %v157, 0
  %v823 = vsel %vm461, %v159, 0
  %v825 = vsel %vm461, %v161, 0
  %v828 = vsel %vm510, %v455, 0
  %830 = vmatpush.msra.mxu0 0.0
  %831 = vmatpush.msra.mxu0 0.0
  %832 = vmatpush.msra.mxu0 0.0
  %833 = vmatpush.msra.mxu0 0.0
  %834 = vmatpush.msra.mxu0 0.0
  %835 = vmatpush.msra.mxu0 0.0
  %836 = vmatpush.msra.mxu0 0.0
  %837 = vmatpush.msra.mxu0 0.0
  %838 = vmatpush.msra.mxu0 0.0
  %839 = vmatpush.msra.mxu0 0.0
  %840 = vmatpush.msra.mxu0 0.0
  %841 = vmatpush.msra.mxu0 0.0
  %842 = vmatpush.msra.mxu0 0.0
  %843 = vmatpush.msra.mxu0 0.0
  %844 = vmatpush.msra.mxu0 0.0
  %845 = vmatpush.msra.mxu0 %v828
  %846 = vmatmul.f32.gmra.mxu0 %v795
  %v847 = vpop.f32.mrf.mxu0
  %v848 = vadd.f32 0.0, %v847
  %849 = vmatmul.f32.gmra.mxu0 %v797
  %v850 = vpop.f32.mrf.mxu0
  %v851 = vadd.f32 0.0, %v850
  %852 = vmatmul.f32.gmra.mxu0 %v799
  %v853 = vpop.f32.mrf.mxu0
  %v854 = vadd.f32 0.0, %v853
  %855 = vmatmul.f32.gmra.mxu0 %v801
  %v856 = vpop.f32.mrf.mxu0
  %v857 = vadd.f32 0.0, %v856
  %858 = vmatmul.f32.gmra.mxu0 %v803
  %v859 = vpop.f32.mrf.mxu0
  %v860 = vadd.f32 0.0, %v859
  %861 = vmatmul.f32.gmra.mxu0 %v805
  %v862 = vpop.f32.mrf.mxu0
  %v863 = vadd.f32 0.0, %v862
  %864 = vmatmul.f32.gmra.mxu0 %v807
  %v865 = vpop.f32.mrf.mxu0
  %v866 = vadd.f32 0.0, %v865
  %867 = vmatmul.f32.gmra.mxu0 %v809
  %v868 = vpop.f32.mrf.mxu0
  %v869 = vadd.f32 0.0, %v868
  %870 = vmatmul.f32.gmra.mxu0 %v811
  %v871 = vpop.f32.mrf.mxu0
  %v872 = vadd.f32 0.0, %v871
  %873 = vmatmul.f32.gmra.mxu0 %v813
  %v874 = vpop.f32.mrf.mxu0
  %v875 = vadd.f32 0.0, %v874
  %876 = vmatmul.f32.gmra.mxu0 %v815
  %v877 = vpop.f32.mrf.mxu0
  %v878 = vadd.f32 0.0, %v877
  %879 = vmatmul.f32.gmra.mxu0 %v817
  %v880 = vpop.f32.mrf.mxu0
  %v881 = vadd.f32 0.0, %v880
  %882 = vmatmul.f32.gmra.mxu0 %v819
  %v883 = vpop.f32.mrf.mxu0
  %v884 = vadd.f32 0.0, %v883
  %885 = vmatmul.f32.gmra.mxu0 %v821
  %v886 = vpop.f32.mrf.mxu0
  %v887 = vadd.f32 0.0, %v886
  %888 = vmatmul.f32.gmra.mxu0 %v823
  %v889 = vpop.f32.mrf.mxu0
  %v890 = vadd.f32 0.0, %v889
  %891 = vmatmul.f32.gmra.mxu0 %v825
  %v892 = vpop.f32.mrf.mxu0
  %v893 = vadd.f32 0.0, %v892
  %894 = vdwg.mxu0
  %v895 = vadd.f32 %v779, %v848
  %v896 = vadd.f32 %v780, %v851
  %v897 = vadd.f32 %v781, %v854
  %v898 = vadd.f32 %v782, %v857
  %v899 = vadd.f32 %v783, %v860
  %v900 = vadd.f32 %v784, %v863
  %v901 = vadd.f32 %v785, %v866
  %v902 = vadd.f32 %v786, %v869
  %v903 = vadd.f32 %v787, %v872
  %v904 = vadd.f32 %v788, %v875
  %v905 = vadd.f32 %v789, %v878
  %v906 = vadd.f32 %v790, %v881
  %v907 = vadd.f32 %v791, %v884
  %v908 = vadd.f32 %v792, %v887
  %v909 = vadd.f32 %v793, %v890
  %v910 = vadd.f32 %v794, %v893
  %v912 = vsel %vm461, %v163, 0
  %v915 = vsel %vm461, %v164, 0
  %v918 = vsel %vm461, %v165, 0
  %v921 = vsel %vm461, %v166, 0
  %v924 = vsel %vm461, %v167, 0
  %v927 = vsel %vm461, %v168, 0
  %v930 = vsel %vm461, %v169, 0
  %v933 = vsel %vm461, %v170, 0
  %v936 = vsel %vm461, %v171, 0
  %v939 = vsel %vm461, %v172, 0
  %v942 = vsel %vm461, %v173, 0
  %v945 = vsel %vm461, %v174, 0
  %v948 = vsel %vm461, %v175, 0
  %v951 = vsel %vm461, %v176, 0
  %v954 = vsel %vm461, %v177, 0
  %v957 = vsel %vm461, %v178, 0
  %v960 = vsel %vm510, %v456, 0
  %962 = vmatpush.msra.mxu0 0.0
  %963 = vmatpush.msra.mxu0 0.0
  %964 = vmatpush.msra.mxu0 0.0
  %965 = vmatpush.msra.mxu0 0.0
  %966 = vmatpush.msra.mxu0 0.0
  %967 = vmatpush.msra.mxu0 0.0
  %968 = vmatpush.msra.mxu0 0.0
  %969 = vmatpush.msra.mxu0 0.0
  %970 = vmatpush.msra.mxu0 0.0
  %971 = vmatpush.msra.mxu0 0.0
  %972 = vmatpush.msra.mxu0 0.0
  %973 = vmatpush.msra.mxu0 0.0
  %974 = vmatpush.msra.mxu0 0.0
  %975 = vmatpush.msra.mxu0 0.0
  %976 = vmatpush.msra.mxu0 0.0
  %977 = vmatpush.msra.mxu0 %v960
  %978 = vmatmul.f32.gmra.mxu0 %v912
  %v979 = vpop.f32.mrf.mxu0
  %v980 = vadd.f32 0.0, %v979
  %981 = vmatmul.f32.gmra.mxu0 %v915
  %v982 = vpop.f32.mrf.mxu0
  %v983 = vadd.f32 0.0, %v982
  %984 = vmatmul.f32.gmra.mxu0 %v918
  %v985 = vpop.f32.mrf.mxu0
  %v986 = vadd.f32 0.0, %v985
  %987 = vmatmul.f32.gmra.mxu0 %v921
  %v988 = vpop.f32.mrf.mxu0
  %v989 = vadd.f32 0.0, %v988
  %990 = vmatmul.f32.gmra.mxu0 %v924
  %v991 = vpop.f32.mrf.mxu0
  %v992 = vadd.f32 0.0, %v991
  %993 = vmatmul.f32.gmra.mxu0 %v927
  %v994 = vpop.f32.mrf.mxu0
  %v995 = vadd.f32 0.0, %v994
  %996 = vmatmul.f32.gmra.mxu0 %v930
  %v997 = vpop.f32.mrf.mxu0
  %v998 = vadd.f32 0.0, %v997
  %999 = vmatmul.f32.gmra.mxu0 %v933
  %v1000 = vpop.f32.mrf.mxu0
  %v1001 = vadd.f32 0.0, %v1000
  %1002 = vmatmul.f32.gmra.mxu0 %v936
  %v1003 = vpop.f32.mrf.mxu0
  %v1004 = vadd.f32 0.0, %v1003
  %1005 = vmatmul.f32.gmra.mxu0 %v939
  %v1006 = vpop.f32.mrf.mxu0
  %v1007 = vadd.f32 0.0, %v1006
  %1008 = vmatmul.f32.gmra.mxu0 %v942
  %v1009 = vpop.f32.mrf.mxu0
  %v1010 = vadd.f32 0.0, %v1009
  %1011 = vmatmul.f32.gmra.mxu0 %v945
  %v1012 = vpop.f32.mrf.mxu0
  %v1013 = vadd.f32 0.0, %v1012
  %1014 = vmatmul.f32.gmra.mxu0 %v948
  %v1015 = vpop.f32.mrf.mxu0
  %v1016 = vadd.f32 0.0, %v1015
  %1017 = vmatmul.f32.gmra.mxu0 %v951
  %v1018 = vpop.f32.mrf.mxu0
  %v1019 = vadd.f32 0.0, %v1018
  %1020 = vmatmul.f32.gmra.mxu0 %v954
  %v1021 = vpop.f32.mrf.mxu0
  %v1022 = vadd.f32 0.0, %v1021
  %1023 = vmatmul.f32.gmra.mxu0 %v957
  %v1024 = vpop.f32.mrf.mxu0
  %v1025 = vadd.f32 0.0, %v1024
  %1026 = vdwg.mxu0
  %v1027 = vadd.f32 %v895, %v980
  %v1028 = vadd.f32 %v896, %v983
  %v1029 = vadd.f32 %v897, %v986
  %v1030 = vadd.f32 %v898, %v989
  %v1031 = vadd.f32 %v899, %v992
  %v1032 = vadd.f32 %v900, %v995
  %v1033 = vadd.f32 %v901, %v998
  %v1034 = vadd.f32 %v902, %v1001
  %v1035 = vadd.f32 %v903, %v1004
  %v1036 = vadd.f32 %v904, %v1007
  %v1037 = vadd.f32 %v905, %v1010
  %v1038 = vadd.f32 %v906, %v1013
  %v1039 = vadd.f32 %v907, %v1016
  %v1040 = vadd.f32 %v908, %v1019
  %v1041 = vadd.f32 %v909, %v1022
  %v1042 = vadd.f32 %v910, %v1025
  %v1043 = vsel %vm461, %v294, 0
  %v1045 = vsel %vm461, %v297, 0
  %v1047 = vsel %vm461, %v300, 0
  %v1049 = vsel %vm461, %v303, 0
  %v1051 = vsel %vm461, %v306, 0
  %v1053 = vsel %vm461, %v309, 0
  %v1055 = vsel %vm461, %v312, 0
  %v1057 = vsel %vm461, %v315, 0
  %v1059 = vsel %vm461, %v318, 0
  %v1061 = vsel %vm461, %v321, 0
  %v1063 = vsel %vm461, %v324, 0
  %v1065 = vsel %vm461, %v327, 0
  %v1067 = vsel %vm461, %v330, 0
  %v1069 = vsel %vm461, %v333, 0
  %v1071 = vsel %vm461, %v336, 0
  %v1073 = vsel %vm461, %v339, 0
  %v1076 = vsel %vm510, %v457, 0
  %1078 = vmatpush.msra.mxu0 0.0
  %1079 = vmatpush.msra.mxu0 0.0
  %1080 = vmatpush.msra.mxu0 0.0
  %1081 = vmatpush.msra.mxu0 0.0
  %1082 = vmatpush.msra.mxu0 0.0
  %1083 = vmatpush.msra.mxu0 0.0
  %1084 = vmatpush.msra.mxu0 0.0
  %1085 = vmatpush.msra.mxu0 0.0
  %1086 = vmatpush.msra.mxu0 0.0
  %1087 = vmatpush.msra.mxu0 0.0
  %1088 = vmatpush.msra.mxu0 0.0
  %1089 = vmatpush.msra.mxu0 0.0
  %1090 = vmatpush.msra.mxu0 0.0
  %1091 = vmatpush.msra.mxu0 0.0
  %1092 = vmatpush.msra.mxu0 0.0
  %1093 = vmatpush.msra.mxu0 %v1076
  %1094 = vmatmul.f32.gmra.mxu0 %v1043
  %v1095 = vpop.f32.mrf.mxu0
  %v1096 = vadd.f32 0.0, %v1095
  %1097 = vmatmul.f32.gmra.mxu0 %v1045
  %v1098 = vpop.f32.mrf.mxu0
  %v1099 = vadd.f32 0.0, %v1098
  %1100 = vmatmul.f32.gmra.mxu0 %v1047
  %v1101 = vpop.f32.mrf.mxu0
  %v1102 = vadd.f32 0.0, %v1101
  %1103 = vmatmul.f32.gmra.mxu0 %v1049
  %v1104 = vpop.f32.mrf.mxu0
  %v1105 = vadd.f32 0.0, %v1104
  %1106 = vmatmul.f32.gmra.mxu0 %v1051
  %v1107 = vpop.f32.mrf.mxu0
  %v1108 = vadd.f32 0.0, %v1107
  %1109 = vmatmul.f32.gmra.mxu0 %v1053
  %v1110 = vpop.f32.mrf.mxu0
  %v1111 = vadd.f32 0.0, %v1110
  %1112 = vmatmul.f32.gmra.mxu0 %v1055
  %v1113 = vpop.f32.mrf.mxu0
  %v1114 = vadd.f32 0.0, %v1113
  %1115 = vmatmul.f32.gmra.mxu0 %v1057
  %v1116 = vpop.f32.mrf.mxu0
  %v1117 = vadd.f32 0.0, %v1116
  %1118 = vmatmul.f32.gmra.mxu0 %v1059
  %v1119 = vpop.f32.mrf.mxu0
  %v1120 = vadd.f32 0.0, %v1119
  %1121 = vmatmul.f32.gmra.mxu0 %v1061
  %v1122 = vpop.f32.mrf.mxu0
  %v1123 = vadd.f32 0.0, %v1122
  %1124 = vmatmul.f32.gmra.mxu0 %v1063
  %v1125 = vpop.f32.mrf.mxu0
  %v1126 = vadd.f32 0.0, %v1125
  %1127 = vmatmul.f32.gmra.mxu0 %v1065
  %v1128 = vpop.f32.mrf.mxu0
  %v1129 = vadd.f32 0.0, %v1128
  %1130 = vmatmul.f32.gmra.mxu0 %v1067
  %v1131 = vpop.f32.mrf.mxu0
  %v1132 = vadd.f32 0.0, %v1131
  %1133 = vmatmul.f32.gmra.mxu0 %v1069
  %v1134 = vpop.f32.mrf.mxu0
  %v1135 = vadd.f32 0.0, %v1134
  %1136 = vmatmul.f32.gmra.mxu0 %v1071
  %v1137 = vpop.f32.mrf.mxu0
  %v1138 = vadd.f32 0.0, %v1137
  %1139 = vmatmul.f32.gmra.mxu0 %v1073
  %v1140 = vpop.f32.mrf.mxu0
  %v1141 = vadd.f32 0.0, %v1140
  %1142 = vdwg.mxu0
  %v1143 = vadd.f32 %v1027, %v1096
  %v1144 = vadd.f32 %v1028, %v1099
  %v1145 = vadd.f32 %v1029, %v1102
  %v1146 = vadd.f32 %v1030, %v1105
  %v1147 = vadd.f32 %v1031, %v1108
  %v1148 = vadd.f32 %v1032, %v1111
  %v1149 = vadd.f32 %v1033, %v1114
  %v1150 = vadd.f32 %v1034, %v1117
  %v1151 = vadd.f32 %v1035, %v1120
  %v1152 = vadd.f32 %v1036, %v1123
  %v1153 = vadd.f32 %v1037, %v1126
  %v1154 = vadd.f32 %v1038, %v1129
  %v1155 = vadd.f32 %v1039, %v1132
  %v1156 = vadd.f32 %v1040, %v1135
  %v1157 = vadd.f32 %v1041, %v1138
  %v1158 = vadd.f32 %v1042, %v1141
  %v1159 = vsel %vm461, %v67, 0
  %v1161 = vsel %vm461, %v69, 0
  %v1163 = vsel %vm461, %v71, 0
  %v1165 = vsel %vm461, %v73, 0
  %v1167 = vsel %vm461, %v75, 0
  %v1169 = vsel %vm461, %v77, 0
  %v1171 = vsel %vm461, %v79, 0
  %v1173 = vsel %vm461, %v81, 0
  %v1175 = vsel %vm461, %v83, 0
  %v1177 = vsel %vm461, %v85, 0
  %v1179 = vsel %vm461, %v87, 0
  %v1181 = vsel %vm461, %v89, 0
  %v1183 = vsel %vm461, %v91, 0
  %v1185 = vsel %vm461, %v93, 0
  %v1187 = vsel %vm461, %v95, 0
  %v1189 = vsel %vm461, %v97, 0
  %v1192 = vsel %vm510, %v458, 0
  %1194 = vmatpush.msra.mxu0 0.0
  %1195 = vmatpush.msra.mxu0 0.0
  %1196 = vmatpush.msra.mxu0 0.0
  %1197 = vmatpush.msra.mxu0 0.0
  %1198 = vmatpush.msra.mxu0 0.0
  %1199 = vmatpush.msra.mxu0 0.0
  %1200 = vmatpush.msra.mxu0 0.0
  %1201 = vmatpush.msra.mxu0 0.0
  %1202 = vmatpush.msra.mxu0 0.0
  %1203 = vmatpush.msra.mxu0 0.0
  %1204 = vmatpush.msra.mxu0 0.0
  %1205 = vmatpush.msra.mxu0 0.0
  %1206 = vmatpush.msra.mxu0 0.0
  %1207 = vmatpush.msra.mxu0 0.0
  %1208 = vmatpush.msra.mxu0 0.0
  %1209 = vmatpush.msra.mxu0 %v1192
  %1210 = vmatmul.f32.gmra.mxu0 %v1159
  %v1211 = vpop.f32.mrf.mxu0
  %v1212 = vadd.f32 0.0, %v1211
  %1213 = vmatmul.f32.gmra.mxu0 %v1161
  %v1214 = vpop.f32.mrf.mxu0
  %v1215 = vadd.f32 0.0, %v1214
  %1216 = vmatmul.f32.gmra.mxu0 %v1163
  %v1217 = vpop.f32.mrf.mxu0
  %v1218 = vadd.f32 0.0, %v1217
  %1219 = vmatmul.f32.gmra.mxu0 %v1165
  %v1220 = vpop.f32.mrf.mxu0
  %v1221 = vadd.f32 0.0, %v1220
  %1222 = vmatmul.f32.gmra.mxu0 %v1167
  %v1223 = vpop.f32.mrf.mxu0
  %v1224 = vadd.f32 0.0, %v1223
  %1225 = vmatmul.f32.gmra.mxu0 %v1169
  %v1226 = vpop.f32.mrf.mxu0
  %v1227 = vadd.f32 0.0, %v1226
  %1228 = vmatmul.f32.gmra.mxu0 %v1171
  %v1229 = vpop.f32.mrf.mxu0
  %v1230 = vadd.f32 0.0, %v1229
  %1231 = vmatmul.f32.gmra.mxu0 %v1173
  %v1232 = vpop.f32.mrf.mxu0
  %v1233 = vadd.f32 0.0, %v1232
  %1234 = vmatmul.f32.gmra.mxu0 %v1175
  %v1235 = vpop.f32.mrf.mxu0
  %v1236 = vadd.f32 0.0, %v1235
  %1237 = vmatmul.f32.gmra.mxu0 %v1177
  %v1238 = vpop.f32.mrf.mxu0
  %v1239 = vadd.f32 0.0, %v1238
  %1240 = vmatmul.f32.gmra.mxu0 %v1179
  %v1241 = vpop.f32.mrf.mxu0
  %v1242 = vadd.f32 0.0, %v1241
  %1243 = vmatmul.f32.gmra.mxu0 %v1181
  %v1244 = vpop.f32.mrf.mxu0
  %v1245 = vadd.f32 0.0, %v1244
  %1246 = vmatmul.f32.gmra.mxu0 %v1183
  %v1247 = vpop.f32.mrf.mxu0
  %v1248 = vadd.f32 0.0, %v1247
  %1249 = vmatmul.f32.gmra.mxu0 %v1185
  %v1250 = vpop.f32.mrf.mxu0
  %v1251 = vadd.f32 0.0, %v1250
  %1252 = vmatmul.f32.gmra.mxu0 %v1187
  %v1253 = vpop.f32.mrf.mxu0
  %v1254 = vadd.f32 0.0, %v1253
  %1255 = vmatmul.f32.gmra.mxu0 %v1189
  %v1256 = vpop.f32.mrf.mxu0
  %v1257 = vadd.f32 0.0, %v1256
  %1258 = vdwg.mxu0
  %v1259 = vadd.f32 %v1143, %v1212
  %v1260 = vadd.f32 %v1144, %v1215
  %v1261 = vadd.f32 %v1145, %v1218
  %v1262 = vadd.f32 %v1146, %v1221
  %v1263 = vadd.f32 %v1147, %v1224
  %v1264 = vadd.f32 %v1148, %v1227
  %v1265 = vadd.f32 %v1149, %v1230
  %v1266 = vadd.f32 %v1150, %v1233
  %v1267 = vadd.f32 %v1151, %v1236
  %v1268 = vadd.f32 %v1152, %v1239
  %v1269 = vadd.f32 %v1153, %v1242
  %v1270 = vadd.f32 %v1154, %v1245
  %v1271 = vadd.f32 %v1155, %v1248
  %v1272 = vadd.f32 %v1156, %v1251
  %v1273 = vadd.f32 %v1157, %v1254
  %v1274 = vadd.f32 %v1158, %v1257
  %v1276 = vsel %vm461, %v115, 0
  %v1279 = vsel %vm461, %v116, 0
  %v1282 = vsel %vm461, %v117, 0
  %v1285 = vsel %vm461, %v118, 0
  %v1288 = vsel %vm461, %v119, 0
  %v1291 = vsel %vm461, %v120, 0
  %v1294 = vsel %vm461, %v121, 0
  %v1297 = vsel %vm461, %v122, 0
  %v1300 = vsel %vm461, %v123, 0
  %v1303 = vsel %vm461, %v124, 0
  %v1306 = vsel %vm461, %v125, 0
  %v1309 = vsel %vm461, %v126, 0
  %v1312 = vsel %vm461, %v127, 0
  %v1315 = vsel %vm461, %v128, 0
  %v1318 = vsel %vm461, %v129, 0
  %v1321 = vsel %vm461, %v130, 0
  %v1324 = vsel %vm510, %v459, 0
  %1326 = vmatpush.msra.mxu0 0.0
  %1327 = vmatpush.msra.mxu0 0.0
  %1328 = vmatpush.msra.mxu0 0.0
  %1329 = vmatpush.msra.mxu0 0.0
  %1330 = vmatpush.msra.mxu0 0.0
  %1331 = vmatpush.msra.mxu0 0.0
  %1332 = vmatpush.msra.mxu0 0.0
  %1333 = vmatpush.msra.mxu0 0.0
  %1334 = vmatpush.msra.mxu0 0.0
  %1335 = vmatpush.msra.mxu0 0.0
  %1336 = vmatpush.msra.mxu0 0.0
  %1337 = vmatpush.msra.mxu0 0.0
  %1338 = vmatpush.msra.mxu0 0.0
  %1339 = vmatpush.msra.mxu0 0.0
  %1340 = vmatpush.msra.mxu0 0.0
  %1341 = vmatpush.msra.mxu0 %v1324
  %1342 = vmatmul.f32.gmra.mxu0 %v1276
  %v1343 = vpop.f32.mrf.mxu0
  %v1344 = vadd.f32 0.0, %v1343
  %1345 = vmatmul.f32.gmra.mxu0 %v1279
  %v1346 = vpop.f32.mrf.mxu0
  %v1347 = vadd.f32 0.0, %v1346
  %1348 = vmatmul.f32.gmra.mxu0 %v1282
  %v1349 = vpop.f32.mrf.mxu0
  %v1350 = vadd.f32 0.0, %v1349
  %1351 = vmatmul.f32.gmra.mxu0 %v1285
  %v1352 = vpop.f32.mrf.mxu0
  %v1353 = vadd.f32 0.0, %v1352
  %1354 = vmatmul.f32.gmra.mxu0 %v1288
  %v1355 = vpop.f32.mrf.mxu0
  %v1356 = vadd.f32 0.0, %v1355
  %1357 = vmatmul.f32.gmra.mxu0 %v1291
  %v1358 = vpop.f32.mrf.mxu0
  %v1359 = vadd.f32 0.0, %v1358
  %1360 = vmatmul.f32.gmra.mxu0 %v1294
  %v1361 = vpop.f32.mrf.mxu0
  %v1362 = vadd.f32 0.0, %v1361
  %1363 = vmatmul.f32.gmra.mxu0 %v1297
  %v1364 = vpop.f32.mrf.mxu0
  %v1365 = vadd.f32 0.0, %v1364
  %1366 = vmatmul.f32.gmra.mxu0 %v1300
  %v1367 = vpop.f32.mrf.mxu0
  %v1368 = vadd.f32 0.0, %v1367
  %1369 = vmatmul.f32.gmra.mxu0 %v1303
  %v1370 = vpop.f32.mrf.mxu0
  %v1371 = vadd.f32 0.0, %v1370
  %1372 = vmatmul.f32.gmra.mxu0 %v1306
  %v1373 = vpop.f32.mrf.mxu0
  %v1374 = vadd.f32 0.0, %v1373
  %1375 = vmatmul.f32.gmra.mxu0 %v1309
  %v1376 = vpop.f32.mrf.mxu0
  %v1377 = vadd.f32 0.0, %v1376
  %1378 = vmatmul.f32.gmra.mxu0 %v1312
  %v1379 = vpop.f32.mrf.mxu0
  %v1380 = vadd.f32 0.0, %v1379
  %1381 = vmatmul.f32.gmra.mxu0 %v1315
  %v1382 = vpop.f32.mrf.mxu0
  %v1383 = vadd.f32 0.0, %v1382
  %1384 = vmatmul.f32.gmra.mxu0 %v1318
  %v1385 = vpop.f32.mrf.mxu0
  %v1386 = vadd.f32 0.0, %v1385
  %1387 = vmatmul.f32.gmra.mxu0 %v1321
  %v1388 = vpop.f32.mrf.mxu0
  %v1389 = vadd.f32 0.0, %v1388
  %1390 = vdwg.mxu0
  %v1391 = vadd.f32 %v1259, %v1344
  %v1392 = vadd.f32 %v1260, %v1347
  %v1393 = vadd.f32 %v1261, %v1350
  %v1394 = vadd.f32 %v1262, %v1353
  %v1395 = vadd.f32 %v1263, %v1356
  %v1396 = vadd.f32 %v1264, %v1359
  %v1397 = vadd.f32 %v1265, %v1362
  %v1398 = vadd.f32 %v1266, %v1365
  %v1399 = vadd.f32 %v1267, %v1368
  %v1400 = vadd.f32 %v1268, %v1371
  %v1401 = vadd.f32 %v1269, %v1374
  %v1402 = vadd.f32 %v1270, %v1377
  %v1403 = vadd.f32 %v1271, %v1380
  %v1404 = vadd.f32 %v1272, %v1383
  %v1405 = vadd.f32 %v1273, %v1386
  %v1406 = vadd.f32 %v1274, %v1389
  %v1407 = vsel %vm461, %v390, 0
  %v1409 = vsel %vm461, %v393, 0
  %v1411 = vsel %vm461, %v396, 0
  %v1413 = vsel %vm461, %v399, 0
  %v1415 = vsel %vm461, %v402, 0
  %v1417 = vsel %vm461, %v405, 0
  %v1419 = vsel %vm461, %v408, 0
  %v1421 = vsel %vm461, %v411, 0
  %v1423 = vsel %vm461, %v414, 0
  %v1425 = vsel %vm461, %v417, 0
  %v1427 = vsel %vm461, %v420, 0
  %v1429 = vsel %vm461, %v423, 0
  %v1431 = vsel %vm461, %v426, 0
  %v1433 = vsel %vm461, %v429, 0
  %v1435 = vsel %vm461, %v432, 0
  %v1437 = vsel %vm461, %v435, 0
  %v1440 = vsel %vm510, %v460, 0
  %1442 = vmatpush.msra.mxu0 0.0
  %1443 = vmatpush.msra.mxu0 0.0
  %1444 = vmatpush.msra.mxu0 0.0
  %1445 = vmatpush.msra.mxu0 0.0
  %1446 = vmatpush.msra.mxu0 0.0
  %1447 = vmatpush.msra.mxu0 0.0
  %1448 = vmatpush.msra.mxu0 0.0
  %1449 = vmatpush.msra.mxu0 0.0
  %1450 = vmatpush.msra.mxu0 0.0
  %1451 = vmatpush.msra.mxu0 0.0
  %1452 = vmatpush.msra.mxu0 0.0
  %1453 = vmatpush.msra.mxu0 0.0
  %1454 = vmatpush.msra.mxu0 0.0
  %1455 = vmatpush.msra.mxu0 0.0
  %1456 = vmatpush.msra.mxu0 0.0
  %1457 = vmatpush.msra.mxu0 %v1440
  %1458 = vmatmul.f32.gmra.mxu0 %v1407
  %v1459 = vpop.f32.mrf.mxu0
  %v1460 = vadd.f32 0.0, %v1459
  %1461 = vmatmul.f32.gmra.mxu0 %v1409
  %v1462 = vpop.f32.mrf.mxu0
  %v1463 = vadd.f32 0.0, %v1462
  %1464 = vmatmul.f32.gmra.mxu0 %v1411
  %v1465 = vpop.f32.mrf.mxu0
  %v1466 = vadd.f32 0.0, %v1465
  %1467 = vmatmul.f32.gmra.mxu0 %v1413
  %v1468 = vpop.f32.mrf.mxu0
  %v1469 = vadd.f32 0.0, %v1468
  %1470 = vmatmul.f32.gmra.mxu0 %v1415
  %v1471 = vpop.f32.mrf.mxu0
  %v1472 = vadd.f32 0.0, %v1471
  %1473 = vmatmul.f32.gmra.mxu0 %v1417
  %v1474 = vpop.f32.mrf.mxu0
  %v1475 = vadd.f32 0.0, %v1474
  %1476 = vmatmul.f32.gmra.mxu0 %v1419
  %v1477 = vpop.f32.mrf.mxu0
  %v1478 = vadd.f32 0.0, %v1477
  %1479 = vmatmul.f32.gmra.mxu0 %v1421
  %v1480 = vpop.f32.mrf.mxu0
  %v1481 = vadd.f32 0.0, %v1480
  %1482 = vmatmul.f32.gmra.mxu0 %v1423
  %v1483 = vpop.f32.mrf.mxu0
  %v1484 = vadd.f32 0.0, %v1483
  %1485 = vmatmul.f32.gmra.mxu0 %v1425
  %v1486 = vpop.f32.mrf.mxu0
  %v1487 = vadd.f32 0.0, %v1486
  %1488 = vmatmul.f32.gmra.mxu0 %v1427
  %v1489 = vpop.f32.mrf.mxu0
  %v1490 = vadd.f32 0.0, %v1489
  %1491 = vmatmul.f32.gmra.mxu0 %v1429
  %v1492 = vpop.f32.mrf.mxu0
  %v1493 = vadd.f32 0.0, %v1492
  %1494 = vmatmul.f32.gmra.mxu0 %v1431
  %v1495 = vpop.f32.mrf.mxu0
  %v1496 = vadd.f32 0.0, %v1495
  %1497 = vmatmul.f32.gmra.mxu0 %v1433
  %v1498 = vpop.f32.mrf.mxu0
  %v1499 = vadd.f32 0.0, %v1498
  %1500 = vmatmul.f32.gmra.mxu0 %v1435
  %v1501 = vpop.f32.mrf.mxu0
  %v1502 = vadd.f32 0.0, %v1501
  %1503 = vmatmul.f32.gmra.mxu0 %v1437
  %v1504 = vpop.f32.mrf.mxu0
  %v1505 = vadd.f32 0.0, %v1504
  %1506 = vdwg.mxu0
  %v1507 = vadd.f32 %v1391, %v1460
  %v1508 = vadd.f32 %v1392, %v1463
  %v1509 = vadd.f32 %v1393, %v1466
  %v1510 = vadd.f32 %v1394, %v1469
  %v1511 = vadd.f32 %v1395, %v1472
  %v1512 = vadd.f32 %v1396, %v1475
  %v1513 = vadd.f32 %v1397, %v1478
  %v1514 = vadd.f32 %v1398, %v1481
  %v1515 = vadd.f32 %v1399, %v1484
  %v1516 = vadd.f32 %v1400, %v1487
  %v1517 = vadd.f32 %v1401, %v1490
  %v1518 = vadd.f32 %v1402, %v1493
  %v1519 = vadd.f32 %v1403, %v1496
  %v1520 = vadd.f32 %v1404, %v1499
  %v1521 = vadd.f32 %v1405, %v1502
  %v1522 = vadd.f32 %v1406, %v1505
  %v1523 = vld [vmem:[%s7] sm:$0x1]
  %v1525 = vperm.slane %v1523, 0
  %v1527 = vadd.f32 %v1507, %v1525
  %v1528 = vadd.f32 %v1508, %v1525
  %v1529 = vadd.f32 %v1509, %v1525
  %v1530 = vadd.f32 %v1510, %v1525
  %v1531 = vadd.f32 %v1511, %v1525
  %v1532 = vadd.f32 %v1512, %v1525
  %v1533 = vadd.f32 %v1513, %v1525
  %v1534 = vadd.f32 %v1514, %v1525
  %v1535 = vadd.f32 %v1515, %v1525
  %v1536 = vadd.f32 %v1516, %v1525
  %v1537 = vadd.f32 %v1517, %v1525
  %v1538 = vadd.f32 %v1518, %v1525
  %v1539 = vadd.f32 %v1519, %v1525
  %v1540 = vadd.f32 %v1520, %v1525
  %v1541 = vadd.f32 %v1521, %v1525
  %v1542 = vadd.f32 %v1522, %v1525
  %v1543 = vmax.f32 %v163, %v294
  %v1544 = vmax.f32 %v164, %v297
  %v1545 = vmax.f32 %v165, %v300
  %v1546 = vmax.f32 %v166, %v303
  %v1547 = vmax.f32 %v167, %v306
  %v1548 = vmax.f32 %v168, %v309
  %v1549 = vmax.f32 %v169, %v312
  %v1550 = vmax.f32 %v170, %v315
  %v1551 = vmax.f32 %v171, %v318
  %v1552 = vmax.f32 %v172, %v321
  %v1553 = vmax.f32 %v173, %v324
  %v1554 = vmax.f32 %v174, %v327
  %v1555 = vmax.f32 %v175, %v330
  %v1556 = vmax.f32 %v176, %v333
  %v1557 = vmax.f32 %v177, %v336
  %v1558 = vmax.f32 %v178, %v339
  %v1559 = vmax.f32 %v115, %v390
  %v1560 = vmax.f32 %v116, %v393
  %v1561 = vmax.f32 %v117, %v396
  %v1562 = vmax.f32 %v118, %v399
  %v1563 = vmax.f32 %v119, %v402
  %v1564 = vmax.f32 %v120, %v405
  %v1565 = vmax.f32 %v121, %v408
  %v1566 = vmax.f32 %v122, %v411
  %v1567 = vmax.f32 %v123, %v414
  %v1568 = vmax.f32 %v124, %v417
  %v1569 = vmax.f32 %v125, %v420
  %v1570 = vmax.f32 %v126, %v423
  %v1571 = vmax.f32 %v127, %v426
  %v1572 = vmax.f32 %v128, %v429
  %v1573 = vmax.f32 %v129, %v432
  %v1574 = vmax.f32 %v130, %v435
  %v1575 = vmax.f32 %v1543, %v1559
  %v1576 = vmax.f32 %v1544, %v1560
  %v1577 = vmax.f32 %v1545, %v1561
  %v1578 = vmax.f32 %v1546, %v1562
  %v1579 = vmax.f32 %v1547, %v1563
  %v1580 = vmax.f32 %v1548, %v1564
  %v1581 = vmax.f32 %v1549, %v1565
  %v1582 = vmax.f32 %v1550, %v1566
  %v1583 = vmax.f32 %v1551, %v1567
  %v1584 = vmax.f32 %v1552, %v1568
  %v1585 = vmax.f32 %v1553, %v1569
  %v1586 = vmax.f32 %v1554, %v1570
  %v1587 = vmax.f32 %v1555, %v1571
  %v1588 = vmax.f32 %v1556, %v1572
  %v1589 = vmax.f32 %v1557, %v1573
  %v1590 = vmax.f32 %v1558, %v1574
  %vm1591 = vcmask 97280
  %1592 = vst.msk [vmem:[%s8] sm:$0xff] %vm1591, %v1527
  %1593 = vst.msk [vmem:[%s8 + $0x8] sm:$0xff] %vm1591, %v1528
  %1594 = vst.msk [vmem:[%s8 + $0x10] sm:$0xff] %vm1591, %v1529
  %1595 = vst.msk [vmem:[%s8 + $0x18] sm:$0xff] %vm1591, %v1530
  %1596 = vst.msk [vmem:[%s8 + $0x20] sm:$0xff] %vm1591, %v1531
  %1597 = vst.msk [vmem:[%s8 + $0x28] sm:$0xff] %vm1591, %v1532
  %1598 = vst.msk [vmem:[%s8 + $0x30] sm:$0xff] %vm1591, %v1533
  %1599 = vst.msk [vmem:[%s8 + $0x38] sm:$0xff] %vm1591, %v1534
  %1600 = vst.msk [vmem:[%s8 + $0x40] sm:$0xff] %vm1591, %v1535
  %1601 = vst.msk [vmem:[%s8 + $0x48] sm:$0xff] %vm1591, %v1536
  %1602 = vst.msk [vmem:[%s8 + $0x50] sm:$0xff] %vm1591, %v1537
  %1603 = vst.msk [vmem:[%s8 + $0x58] sm:$0xff] %vm1591, %v1538
  %1604 = vst.msk [vmem:[%s8 + $0x60] sm:$0xff] %vm1591, %v1539
  %1605 = vst.msk [vmem:[%s8 + $0x68] sm:$0xff] %vm1591, %v1540
  %1606 = vst.msk [vmem:[%s8 + $0x70] sm:$0xff] %vm1591, %v1541
  %1607 = vst.msk [vmem:[%s8 + $0x78] sm:$0xff] %vm1591, %v1542
  %1608 = vst.msk [vmem:[%s9] sm:$0xff] %vm461, %v1575
  %1609 = vst.msk [vmem:[%s9 + $0x8] sm:$0xff] %vm461, %v1576
  %1610 = vst.msk [vmem:[%s9 + $0x10] sm:$0xff] %vm461, %v1577
  %1611 = vst.msk [vmem:[%s9 + $0x18] sm:$0xff] %vm461, %v1578
  %1612 = vst.msk [vmem:[%s9 + $0x20] sm:$0xff] %vm461, %v1579
  %1613 = vst.msk [vmem:[%s9 + $0x28] sm:$0xff] %vm461, %v1580
  %1614 = vst.msk [vmem:[%s9 + $0x30] sm:$0xff] %vm461, %v1581
  %1615 = vst.msk [vmem:[%s9 + $0x38] sm:$0xff] %vm461, %v1582
  %1616 = vst.msk [vmem:[%s9 + $0x40] sm:$0xff] %vm461, %v1583
  %1617 = vst.msk [vmem:[%s9 + $0x48] sm:$0xff] %vm461, %v1584
  %1618 = vst.msk [vmem:[%s9 + $0x50] sm:$0xff] %vm461, %v1585
  %1619 = vst.msk [vmem:[%s9 + $0x58] sm:$0xff] %vm461, %v1586
  %1620 = vst.msk [vmem:[%s9 + $0x60] sm:$0xff] %vm461, %v1587
  %1621 = vst.msk [vmem:[%s9 + $0x68] sm:$0xff] %vm461, %v1588
  %1622 = vst.msk [vmem:[%s9 + $0x70] sm:$0xff] %vm461, %v1589
  %1623 = vst.msk [vmem:[%s9 + $0x78] sm:$0xff] %vm461, %v1590
  %v1624 = vsel %vm1591, %v1527, 0.0
  %v1625 = vsel %vm1591, %v1528, 0.0
  %v1626 = vadd.f32 %v1624, %v1625
  %v1627 = vsel %vm1591, %v1529, 0.0
  %v1628 = vadd.f32 %v1626, %v1627
  %v1629 = vsel %vm1591, %v1530, 0.0
  %v1630 = vadd.f32 %v1628, %v1629
  %v1631 = vsel %vm1591, %v1531, 0.0
  %v1632 = vadd.f32 %v1630, %v1631
  %v1633 = vsel %vm1591, %v1532, 0.0
  %v1634 = vadd.f32 %v1632, %v1633
  %v1635 = vsel %vm1591, %v1533, 0.0
  %v1636 = vadd.f32 %v1634, %v1635
  %v1637 = vsel %vm1591, %v1534, 0.0
  %v1638 = vadd.f32 %v1636, %v1637
  %v1639 = vsel %vm1591, %v1535, 0.0
  %v1640 = vadd.f32 %v1638, %v1639
  %v1641 = vsel %vm1591, %v1536, 0.0
  %v1642 = vadd.f32 %v1640, %v1641
  %v1643 = vsel %vm1591, %v1537, 0.0
  %v1644 = vadd.f32 %v1642, %v1643
  %v1645 = vsel %vm1591, %v1538, 0.0
  %v1646 = vadd.f32 %v1644, %v1645
  %v1647 = vsel %vm1591, %v1539, 0.0
  %v1648 = vadd.f32 %v1646, %v1647
  %v1649 = vsel %vm1591, %v1540, 0.0
  %v1650 = vadd.f32 %v1648, %v1649
  %v1651 = vsel %vm1591, %v1541, 0.0
  %v1652 = vadd.f32 %v1650, %v1651
  %v1653 = vsel %vm1591, %v1542, 0.0
  %v1654 = vadd.f32 %v1652, %v1653
  %v1655 = vrot.slane %v1654, 4
  %v1656 = vadd.f32 %v1654, %v1655
  %v1657 = vrot.slane %v1656, 2
  %v1658 = vadd.f32 %v1656, %v1657
  %v1659 = vrot.slane %v1658, 1
  %v1660 = vadd.f32 %v1658, %v1659
  %vm1661 = vcmask 90112
  %1662 = vst.msk [vmem:[%s10] sm:$0x1] %vm1661, %v1660
  %v1663 = vmul.f32 %v1527, %v1527
  %v1664 = vmul.f32 %v1528, %v1528
  %v1665 = vmul.f32 %v1529, %v1529
  %v1666 = vmul.f32 %v1530, %v1530
  %v1667 = vmul.f32 %v1531, %v1531
  %v1668 = vmul.f32 %v1532, %v1532
  %v1669 = vmul.f32 %v1533, %v1533
  %v1670 = vmul.f32 %v1534, %v1534
  %v1671 = vmul.f32 %v1535, %v1535
  %v1672 = vmul.f32 %v1536, %v1536
  %v1673 = vmul.f32 %v1537, %v1537
  %v1674 = vmul.f32 %v1538, %v1538
  %v1675 = vmul.f32 %v1539, %v1539
  %v1676 = vmul.f32 %v1540, %v1540
  %v1677 = vmul.f32 %v1541, %v1541
  %v1678 = vmul.f32 %v1542, %v1542
  %v1679 = vsel %vm1591, %v1663, 0.0
  %v1680 = vsel %vm1591, %v1664, 0.0
  %v1681 = vadd.f32 %v1679, %v1680
  %v1682 = vsel %vm1591, %v1665, 0.0
  %v1683 = vadd.f32 %v1681, %v1682
  %v1684 = vsel %vm1591, %v1666, 0.0
  %v1685 = vadd.f32 %v1683, %v1684
  %v1686 = vsel %vm1591, %v1667, 0.0
  %v1687 = vadd.f32 %v1685, %v1686
  %v1688 = vsel %vm1591, %v1668, 0.0
  %v1689 = vadd.f32 %v1687, %v1688
  %v1690 = vsel %vm1591, %v1669, 0.0
  %v1691 = vadd.f32 %v1689, %v1690
  %v1692 = vsel %vm1591, %v1670, 0.0
  %v1693 = vadd.f32 %v1691, %v1692
  %v1694 = vsel %vm1591, %v1671, 0.0
  %v1695 = vadd.f32 %v1693, %v1694
  %v1696 = vsel %vm1591, %v1672, 0.0
  %v1697 = vadd.f32 %v1695, %v1696
  %v1698 = vsel %vm1591, %v1673, 0.0
  %v1699 = vadd.f32 %v1697, %v1698
  %v1700 = vsel %vm1591, %v1674, 0.0
  %v1701 = vadd.f32 %v1699, %v1700
  %v1702 = vsel %vm1591, %v1675, 0.0
  %v1703 = vadd.f32 %v1701, %v1702
  %v1704 = vsel %vm1591, %v1676, 0.0
  %v1705 = vadd.f32 %v1703, %v1704
  %v1706 = vsel %vm1591, %v1677, 0.0
  %v1707 = vadd.f32 %v1705, %v1706
  %v1708 = vsel %vm1591, %v1678, 0.0
  %v1709 = vadd.f32 %v1707, %v1708
  %v1710 = vrot.slane %v1709, 4
  %v1711 = vadd.f32 %v1709, %v1710
  %v1712 = vrot.slane %v1711, 2
  %v1713 = vadd.f32 %v1711, %v1712
  %v1714 = vrot.slane %v1713, 1
  %v1715 = vadd.f32 %v1713, %v1714
  %1716 = vst.msk [vmem:[%s11] sm:$0x1] %vm1661, %v1715
  %v1717 = vsel %vm461, %v1575, 0.0
  %v1718 = vsel %vm461, %v1576, 0.0
  %v1719 = vadd.f32 %v1717, %v1718
  %v1720 = vsel %vm461, %v1577, 0.0
  %v1721 = vadd.f32 %v1719, %v1720
  %v1722 = vsel %vm461, %v1578, 0.0
  %v1723 = vadd.f32 %v1721, %v1722
  %v1724 = vsel %vm461, %v1579, 0.0
  %v1725 = vadd.f32 %v1723, %v1724
  %v1726 = vsel %vm461, %v1580, 0.0
  %v1727 = vadd.f32 %v1725, %v1726
  %v1728 = vsel %vm461, %v1581, 0.0
  %v1729 = vadd.f32 %v1727, %v1728
  %v1730 = vsel %vm461, %v1582, 0.0
  %v1731 = vadd.f32 %v1729, %v1730
  %v1732 = vsel %vm461, %v1583, 0.0
  %v1733 = vadd.f32 %v1731, %v1732
  %v1734 = vsel %vm461, %v1584, 0.0
  %v1735 = vadd.f32 %v1733, %v1734
  %v1736 = vsel %vm461, %v1585, 0.0
  %v1737 = vadd.f32 %v1735, %v1736
  %v1738 = vsel %vm461, %v1586, 0.0
  %v1739 = vadd.f32 %v1737, %v1738
  %v1740 = vsel %vm461, %v1587, 0.0
  %v1741 = vadd.f32 %v1739, %v1740
  %v1742 = vsel %vm461, %v1588, 0.0
  %v1743 = vadd.f32 %v1741, %v1742
  %v1744 = vsel %vm461, %v1589, 0.0
  %v1745 = vadd.f32 %v1743, %v1744
  %v1746 = vsel %vm461, %v1590, 0.0
  %v1747 = vadd.f32 %v1745, %v1746
  %v1748 = vrot.slane %v1747, 4
  %v1749 = vadd.f32 %v1747, %v1748
  %v1750 = vrot.slane %v1749, 2
  %v1751 = vadd.f32 %v1749, %v1750
  %v1752 = vrot.slane %v1751, 1
  %v1753 = vadd.f32 %v1751, %v1752
  %vm1754 = vcmask 24576
  %1755 = vst.msk [vmem:[%s12] sm:$0x1] %vm1754, %v1753
  %v1756 = vmul.f32 %v1575, %v1575
  %v1757 = vmul.f32 %v1576, %v1576
  %v1758 = vmul.f32 %v1577, %v1577
  %v1759 = vmul.f32 %v1578, %v1578
  %v1760 = vmul.f32 %v1579, %v1579
  %v1761 = vmul.f32 %v1580, %v1580
  %v1762 = vmul.f32 %v1581, %v1581
  %v1763 = vmul.f32 %v1582, %v1582
  %v1764 = vmul.f32 %v1583, %v1583
  %v1765 = vmul.f32 %v1584, %v1584
  %v1766 = vmul.f32 %v1585, %v1585
  %v1767 = vmul.f32 %v1586, %v1586
  %v1768 = vmul.f32 %v1587, %v1587
  %v1769 = vmul.f32 %v1588, %v1588
  %v1770 = vmul.f32 %v1589, %v1589
  %v1771 = vmul.f32 %v1590, %v1590
  %v1772 = vsel %vm461, %v1756, 0.0
  %v1773 = vsel %vm461, %v1757, 0.0
  %v1774 = vadd.f32 %v1772, %v1773
  %v1775 = vsel %vm461, %v1758, 0.0
  %v1776 = vadd.f32 %v1774, %v1775
  %v1777 = vsel %vm461, %v1759, 0.0
  %v1778 = vadd.f32 %v1776, %v1777
  %v1779 = vsel %vm461, %v1760, 0.0
  %v1780 = vadd.f32 %v1778, %v1779
  %v1781 = vsel %vm461, %v1761, 0.0
  %v1782 = vadd.f32 %v1780, %v1781
  %v1783 = vsel %vm461, %v1762, 0.0
  %v1784 = vadd.f32 %v1782, %v1783
  %v1785 = vsel %vm461, %v1763, 0.0
  %v1786 = vadd.f32 %v1784, %v1785
  %v1787 = vsel %vm461, %v1764, 0.0
  %v1788 = vadd.f32 %v1786, %v1787
  %v1789 = vsel %vm461, %v1765, 0.0
  %v1790 = vadd.f32 %v1788, %v1789
  %v1791 = vsel %vm461, %v1766, 0.0
  %v1792 = vadd.f32 %v1790, %v1791
  %v1793 = vsel %vm461, %v1767, 0.0
  %v1794 = vadd.f32 %v1792, %v1793
  %v1795 = vsel %vm461, %v1768, 0.0
  %v1796 = vadd.f32 %v1794, %v1795
  %v1797 = vsel %vm461, %v1769, 0.0
  %v1798 = vadd.f32 %v1796, %v1797
  %v1799 = vsel %vm461, %v1770, 0.0
  %v1800 = vadd.f32 %v1798, %v1799
  %v1801 = vsel %vm461, %v1771, 0.0
  %v1802 = vadd.f32 %v1800, %v1801
  %v1803 = vrot.slane %v1802, 4
  %v1804 = vadd.f32 %v1802, %v1803
  %v1805 = vrot.slane %v1804, 2
  %v1806 = vadd.f32 %v1804, %v1805
  %v1807 = vrot.slane %v1806, 1
  %v1808 = vadd.f32 %v1806, %v1807
  %1809 = vst.msk [vmem:[%s13] sm:$0x1] %vm1754, %v1808
  // Predicated region
  $region34: #{downsampler_block.2} parent=0 // pred_check
    _
  $region35: #{downsampler_block.2} parent=0 // pred_check_branch
    %1811 = sbr.rel (0) target = $region37
  $region36: #{downsampler_block.2} parent=0 // pred_region
    _
  $region37: #{downsampler_block.2} parent=0 // pred_fallthru
    _
  // Predicated region
  $region38: #{downsampler_block.2} parent=0 // pred_check
    _
  $region39: #{downsampler_block.2} parent=0 // pred_check_branch
    %1813 = sbr.rel (0) target = $region41
  $region40: #{downsampler_block.2} parent=0 // pred_region
    _
  $region41: #{downsampler_block.2} parent=0 // pred_fallthru
    _
  // Predicated region
  $region42: #{downsampler_block.2} parent=0 // pred_check
    _
  $region43: #{downsampler_block.2} parent=0 // pred_check_branch
    %1815 = sbr.rel (0) target = $region45
  $region44: #{downsampler_block.2} parent=0 // pred_region
    _
  $region45: #{downsampler_block.2} parent=0 // pred_fallthru
    _
  // Predicated region
  $region46: #{downsampler_block.2} parent=0 // pred_check
    _
  $region47: #{downsampler_block.2} parent=0 // pred_check_branch
    %1817 = sbr.rel (0) target = $region49
  $region48: #{downsampler_block.2} parent=0 // pred_region
    _
  $region49: #{downsampler_block.2} parent=0 // pred_fallthru
    _
  // Predicated region
  $region50: #{downsampler_block.2} parent=0 // pred_check
    _
  $region51: #{downsampler_block.2} parent=0 // pred_check_branch
    %1819 = sbr.rel (0) target = $region53
  $region52: #{downsampler_block.2} parent=0 // pred_region
    _
  $region53: #{downsampler_block.2} parent=0 // pred_fallthru
    _
  // Predicated region
  $region54: #{downsampler_block.2} parent=0 // pred_check
    _
  $region55: #{downsampler_block.2} parent=0 // pred_check_branch
    %1821 = sbr.rel (0) target = $region57
  $region56: #{downsampler_block.2} parent=0 // pred_region
    _
  $region57: #{downsampler_block.2} parent=0 // pred_fallthru
    _
  // Predicated region
  $region58: #{downsampler_block.2} parent=0 // pred_check
    _
  $region59: #{downsampler_block.2} parent=0 // pred_check_branch
    %1823 = sbr.rel (0) target = $region61
  $region60: #{downsampler_block.2} parent=0 // pred_region
    _
  $region61: #{downsampler_block.2} parent=0 // pred_fallthru
    _
  // Predicated region
  $region62: #{downsampler_block.2} parent=0 // pred_check
    _
  $region63: #{downsampler_block.2} parent=0 // pred_check_branch
    %1825 = sbr.rel (0) target = $region65
  $region64: #{downsampler_block.2} parent=0 // pred_region
    _
  $region65: #{downsampler_block.2} parent=0 // pred_fallthru
    _
  // Predicated region
  $region66: #{downsampler_block.2} parent=0 // pred_check
    _
  $region67: #{downsampler_block.2} parent=0 // pred_check_branch
    %1827 = sbr.rel (0) target = $region69
  $region68: #{downsampler_block.2} parent=0 // pred_region
    _
  $region69: #{downsampler_block.2} parent=0 // pred_fallthru
    _
  // Predicated region
  $region70: #{downsampler_block.2} parent=0 // pred_check
    _
  $region71: #{downsampler_block.2} parent=0 // pred_check_branch
    %1829 = sbr.rel (0) target = $region73
  $region72: #{downsampler_block.2} parent=0 // pred_region
    _
  $region73: #{downsampler_block.2} parent=0 // pred_fallthru
    _
  // Predicated region
  $region74: #{downsampler_block.2} parent=0 // pred_check
    _
  $region75: #{downsampler_block.2} parent=0 // pred_check_branch
    %1831 = sbr.rel (0) target = $region77
  $region76: #{downsampler_block.2} parent=0 // pred_region
    _
  $region77: #{downsampler_block.2} parent=0 // pred_fallthru
    _
  // Predicated region
  $region78: #{downsampler_block.2} parent=0 // pred_check
    _
  $region79: #{downsampler_block.2} parent=0 // pred_check_branch
    %1833 = sbr.rel (0) target = $region81
  $region80: #{downsampler_block.2} parent=0 // pred_region
    _
  $region81: #{downsampler_block.2} parent=0 // pred_fallthru
    _

</llo_original>
